<compile_context>
chip_gen: v7x
topology: tpu7x:2x2x1
jax: 0.10.0
libtpu: 0.0.40
codegen_flags: <defaults>
</compile_context>

<pallas_src>
import math
import functools

import jax
import jax.numpy as jnp
from jax import lax
from jax.experimental import pallas as pl
from jax.experimental.pallas import tpu as pltpu


_LN_EPS = 1e-12  # HF BERT LayerNorm default


# ----------------------------------------------------------------------------
# In-kernel helpers
# ----------------------------------------------------------------------------
def _layer_norm_f32(x, gamma, beta, eps):
    mu = jnp.mean(x, axis=-1, keepdims=True)
    xc = x - mu
    var = jnp.mean(xc * xc, axis=-1, keepdims=True)
    return xc * lax.rsqrt(var + eps) * gamma + beta


# ----------------------------------------------------------------------------
# Kernel 1: fused QKV projection + multi-head attention + BertSelfOutput
# ----------------------------------------------------------------------------
def _attention_kernel(h_ref, z_ref, mask_ref,
                      w_qkv_ref, b_qkv_ref, w_ukv_ref, b_ukv_ref,
                      w_ao_ref, b_ao_ref, ln1_g_ref, ln1_b_ref,
                      out_ref, *, num_heads, ln_eps):
    D = h_ref.shape[-1]
    dh = D // num_heads
    cdt = h_ref.dtype                   # matmul-operand dtype (bf16 or f32)

    h = h_ref[...]                      # (S, D)
    z = z_ref[...]                      # (S, D)

    # Fused projections (wide-N GEMMs keep the MXU full), f32 accumulation.
    hp = (jnp.dot(h, w_qkv_ref[...], preferred_element_type=jnp.float32)
          + b_qkv_ref[...])             # (S, 3D)
    zp = (jnp.dot(z, w_ukv_ref[...], preferred_element_type=jnp.float32)
          + b_ukv_ref[...])             # (S, 2D)

    q = hp[:, 0:D]
    k = hp[:, D:2 * D] + zp[:, 0:D]
    v = hp[:, 2 * D:3 * D] + zp[:, D:2 * D]

    mask = mask_ref[...].astype(jnp.float32)   # (1, S) additive key mask
    scale = 1.0 / math.sqrt(dh)

    # TODO(synk): flash-style KV tiling with online softmax for S >~ 1024.
    ctx_heads = []
    for hd in range(num_heads):
        sl = slice(hd * dh, (hd + 1) * dh)
        qh = q[:, sl].astype(cdt)
        kh = k[:, sl].astype(cdt)
        vh = v[:, sl].astype(cdt)
        # Contract on dh directly (no k.T -> no XLU transpose / extra copy).
        s = lax.dot_general(qh, kh, (((1,), (1,)), ((), ())),
                            preferred_element_type=jnp.float32)
        s = s * scale + mask            # mask broadcasts over query rows
        m = jnp.max(s, axis=-1, keepdims=True)
        e = jnp.exp(s - m)
        denom = jnp.sum(e, axis=-1, keepdims=True)
        p = e * pl.reciprocal(denom, approx=True)
        # TODO(synk): attention-prob dropout for training mode (pltpu.prng_*).
        ctx_heads.append(jnp.dot(p.astype(cdt), vh,
                                 preferred_element_type=jnp.float32))
    ctx = jnp.concatenate(ctx_heads, axis=-1)   # (S, D) lane-dense tile

    # BertSelfOutput: dense + residual + LayerNorm (dropout = identity, eval).
    attn = (jnp.dot(ctx.astype(cdt), w_ao_ref[...],
                    preferred_element_type=jnp.float32)
            + b_ao_ref[...] + h.astype(jnp.float32))
    out_ref[...] = _layer_norm_f32(attn, ln1_g_ref[...], ln1_b_ref[...],
                                   ln_eps).astype(out_ref.dtype)


# ----------------------------------------------------------------------------
# Kernel 2: BertIntermediate + BertOutput (FFN + residual + LayerNorm)
# ----------------------------------------------------------------------------
def _ffn_kernel(x_ref, w_i_ref, b_i_ref, w_fo_ref, b_fo_ref,
                ln2_g_ref, ln2_b_ref, out_ref, *, ln_eps):
    cdt = x_ref.dtype
    x = x_ref[...]                      # (tm, D)
    inter = (jnp.dot(x, w_i_ref[...], preferred_element_type=jnp.float32)
             + b_i_ref[...])            # (tm, d_ff)
    # TODO(synk): HF "gelu" is erf-based; tanh approximation used in-kernel.
    inter = jax.nn.gelu(inter, approximate=True)
    y = (jnp.dot(inter.astype(cdt), w_fo_ref[...],
                 preferred_element_type=jnp.float32)
         + b_fo_ref[...] + x.astype(jnp.float32))
    out_ref[...] = _layer_norm_f32(y, ln2_g_ref[...], ln2_b_ref[...],
                                   ln_eps).astype(out_ref.dtype)


# ----------------------------------------------------------------------------
# pallas_call wrappers
# ----------------------------------------------------------------------------
def _compiler_params(n_grid_axes):
    return pltpu.CompilerParams(
        dimension_semantics=("parallel",) * n_grid_axes,
        vmem_limit_bytes=48 * 1024 * 1024,
    )


def _const_spec(shape):
    n = len(shape)
    return pl.BlockSpec(shape, lambda *_: (0,) * n)


def _attention_block(h, z, attention_mask, p, num_heads, ln_eps=_LN_EPS):
    B, S, D = h.shape
    dt = h.dtype

    seq_spec = pl.BlockSpec((None, S, D), lambda b: (b, 0, 0))
    mask_spec = pl.BlockSpec((None, None, 1, S), lambda b: (b, 0, 0, 0))

    in_specs = [
        seq_spec,                   # h
        seq_spec,                   # z
        mask_spec,                  # attention_mask
        _const_spec((D, 3 * D)),    # w_qkv
        _const_spec((1, 3 * D)),    # b_qkv
        _const_spec((D, 2 * D)),    # w_ukv
        _const_spec((1, 2 * D)),    # b_ukv
        _const_spec((D, D)),        # w_ao
        _const_spec((1, D)),        # b_ao
        _const_spec((1, D)),        # ln1_gamma
        _const_spec((1, D)),        # ln1_beta
    ]

    return pl.pallas_call(
        functools.partial(_attention_kernel, num_heads=num_heads,
                          ln_eps=ln_eps),
        out_shape=jax.ShapeDtypeStruct((B, S, D), dt),
        grid=(B,),
        in_specs=in_specs,
        out_specs=seq_spec,
        compiler_params=_compiler_params(1),
    )(h, z, attention_mask,
      p["w_qkv"], p["b_qkv"], p["w_ukv"], p["b_ukv"],
      p["w_ao"], p["b_ao"], p["ln1_g"], p["ln1_b"])


def _ffn_block(x, p, ln_eps=_LN_EPS):
    B, S, D = x.shape
    d_ff = p["w_i"].shape[-1]
    dt = x.dtype

    # Sequence tiling (rows are independent through the FFN + LayerNorm).
    tm = S if (S < 256 or S % 256 != 0) else 256
    n_tiles = S // tm

    row_spec = pl.BlockSpec((None, tm, D), lambda b, i: (b, i, 0))
    in_specs = [
        row_spec,                   # attention output (also the residual)
        _const_spec((D, d_ff)),     # w_i
        _const_spec((1, d_ff)),     # b_i
        _const_spec((d_ff, D)),     # w_fo
        _const_spec((1, D)),        # b_fo
        _const_spec((1, D)),        # ln2_gamma
        _const_spec((1, D)),        # ln2_beta
    ]

    return pl.pallas_call(
        functools.partial(_ffn_kernel, ln_eps=ln_eps),
        out_shape=jax.ShapeDtypeStruct((B, S, D), dt),
        grid=(B, n_tiles),
        in_specs=in_specs,
        out_specs=row_spec,
        compiler_params=_compiler_params(2),
    )(x, p["w_i"], p["b_i"], p["w_fo"], p["b_fo"], p["ln2_g"], p["ln2_b"])


def bert_layer(h, z, attention_mask, params, num_heads, ln_eps=_LN_EPS):
    """Full BertLayer forward (JointFusionAttention variant), eval mode."""
    dt = h.dtype
    p = {
        # Pre-concatenated projection weights: [Wq|Wk|Wv] and [Wuk|Wuv].
        "w_qkv": jnp.concatenate(
            [params["wq"], params["wk"], params["wv"]], axis=1).astype(dt),
        "b_qkv": jnp.concatenate(
            [params["bq"], params["bk"], params["bv"]], axis=1),
        "w_ukv": jnp.concatenate(
            [params["wuk"], params["wuv"]], axis=1).astype(dt),
        "b_ukv": jnp.concatenate([params["buk"], params["buv"]], axis=1),
        "w_ao": params["w_ao"].astype(dt), "b_ao": params["b_ao"],
        "ln1_g": params["ln1_g"], "ln1_b": params["ln1_b"],
        "w_i": params["w_i"].astype(dt), "b_i": params["b_i"],
        "w_fo": params["w_fo"].astype(dt), "b_fo": params["b_fo"],
        "ln2_g": params["ln2_g"], "ln2_b": params["ln2_b"],
    }
    attn_out = _attention_block(h, z, attention_mask, p, num_heads, ln_eps)
    return _ffn_block(attn_out, p, ln_eps)


# ----------------------------------------------------------------------------
# Parameter init (PyTorch Linear shapes; weights stored transposed as (in,out))
# ----------------------------------------------------------------------------
def init_params(key, hidden_size, intermediate_size):
    D, F = hidden_size, intermediate_size
    linears = [("q", D, D), ("k", D, D), ("v", D, D),
               ("uk", D, D), ("uv", D, D),
               ("_ao", D, D), ("_i", D, F), ("_fo", F, D)]
    keys = jax.random.split(key, 2 * len(linears))
    params = {}
    for i, (name, fan_in, fan_out) in enumerate(linears):
        bound = 1.0 / math.sqrt(fan_in)
        params["w" + name] = jax.random.uniform(
            keys[2 * i], (fan_in, fan_out), minval=-bound, maxval=bound,
            dtype=jnp.float32)
        params["b" + name] = jax.random.uniform(
            keys[2 * i + 1], (1, fan_out), minval=-bound, maxval=bound,
            dtype=jnp.float32)
    params["ln1_g"] = jnp.ones((1, D), jnp.float32)
    params["ln1_b"] = jnp.zeros((1, D), jnp.float32)
    params["ln2_g"] = jnp.ones((1, D), jnp.float32)
    params["ln2_b"] = jnp.zeros((1, D), jnp.float32)
    return params


# ----------------------------------------------------------------------------
# Pure-JAX reference (f32 math) for correctness checking
# ----------------------------------------------------------------------------
def reference(h, z, attention_mask, params, num_heads, ln_eps=_LN_EPS):
    f32 = jnp.float32
    B, S, D = h.shape
    dh = D // num_heads
    h32, z32 = h.astype(f32), z.astype(f32)

    q = h32 @ params["wq"] + params["bq"]
    k = h32 @ params["wk"] + params["bk"] + z32 @ params["wuk"] + params["buk"]
    v = h32 @ params["wv"] + params["bv"] + z32 @ params["wuv"] + params["buv"]

    def split(x):
        return jnp.transpose(x.reshape(B, S, num_heads, dh), (0, 2, 1, 3))

    qh, kh, vh = split(q), split(k), split(v)
    scores = jnp.einsum("bhqd,bhkd->bhqk", qh, kh) / math.sqrt(dh)
    scores = scores + attention_mask.astype(f32)
    probs = jax.nn.softmax(scores, axis=-1)
    ctx = jnp.einsum("bhqk,bhkd->bhqd", probs, vh)
    ctx = jnp.transpose(ctx, (0, 2, 1, 3)).reshape(B, S, D)

    def ln(x, g, b):
        mu = jnp.mean(x, axis=-1, keepdims=True)
        var = jnp.mean((x - mu) ** 2, axis=-1, keepdims=True)
        return (x - mu) * lax.rsqrt(var + ln_eps) * g + b

    attn_out = ln(ctx @ params["w_ao"] + params["b_ao"] + h32,
                  params["ln1_g"], params["ln1_b"])
    inter = jax.nn.gelu(attn_out @ params["w_i"] + params["b_i"],
                        approximate=True)
    return ln(inter @ params["w_fo"] + params["b_fo"] + attn_out,
              params["ln2_g"], params["ln2_b"])


if __name__ == "__main__":
    # batch, seq, hidden, heads, intermediate  (dh = 8)
    B, S, D, H, FF = 2, 8, 32, 4, 128

    key = jax.random.PRNGKey(0)
    k_param, k_h, k_z = jax.random.split(key, 3)

    params = init_params(k_param, D, FF)
    h = jax.random.normal(k_h, (B, S, D), dtype=jnp.float32)
    z = jax.random.normal(k_z, (B, S, D), dtype=jnp.float32)

    # Additive attention mask (B, 1, 1, S): batch 1 has the last two keys masked.
    mask = jnp.zeros((B, 1, 1, S), dtype=jnp.float32)
    mask = mask.at[1, 0, 0, -2:].set(-1e9)

    # f32 path
    out = jax.block_until_ready(bert_layer(h, z, mask, params, H))
    ref = reference(h, z, mask, params, H)
    assert out.shape == (B, S, D)
    assert jnp.allclose(out, ref, atol=2e-2, rtol=2e-2), (
        f"f32 max abs err {jnp.max(jnp.abs(out - ref))}")

    # bf16 path (bf16 MXU operands, f32 accumulation)
    h16, z16 = h.astype(jnp.bfloat16), z.astype(jnp.bfloat16)
    out16 = jax.block_until_ready(bert_layer(h16, z16, mask, params, H))
    ref16 = reference(h16, z16, mask, params, H)
    assert out16.dtype == jnp.bfloat16
    err16 = jnp.max(jnp.abs(out16.astype(jnp.float32) - ref16))
    assert jnp.allclose(out16.astype(jnp.float32), ref16,
                        atol=1e-1, rtol=1e-1), f"bf16 max abs err {err16}"

    print("KERNEL_OK")
</pallas_src>

<mosaic_0001>
module attributes {stable_mosaic.version = 11 : i64} {
  func.func @_attention_kernel(%arg0: i32, %arg1: memref<1x8x32xf32, #tpu.memory_space<vmem>>, %arg2: memref<1x8x32xf32, #tpu.memory_space<vmem>>, %arg3: memref<1x1x1x8xf32, #tpu.memory_space<vmem>>, %arg4: memref<32x96xf32, #tpu.memory_space<vmem>>, %arg5: memref<1x96xf32, #tpu.memory_space<vmem>>, %arg6: memref<32x64xf32, #tpu.memory_space<vmem>>, %arg7: memref<1x64xf32, #tpu.memory_space<vmem>>, %arg8: memref<32x32xf32, #tpu.memory_space<vmem>>, %arg9: memref<1x32xf32, #tpu.memory_space<vmem>>, %arg10: memref<1x32xf32, #tpu.memory_space<vmem>>, %arg11: memref<1x32xf32, #tpu.memory_space<vmem>>, %arg12: memref<1x8x32xf32, #tpu.memory_space<vmem>>) attributes {dimension_semantics = [#tpu.dimension_semantics<parallel>], iteration_bounds = array<i64: 2>, scalar_prefetch = 0 : i64, scratch_operands = 0 : i64, tpu.core_type = #tpu.core_type<tc>, window_params = [{transform_indices = @transform_0, window_bounds = array<i64: 1, 8, 32>}, {transform_indices = @transform_1, window_bounds = array<i64: 1, 8, 32>}, {transform_indices = @transform_2, window_bounds = array<i64: 1, 1, 1, 8>}, {pipeline_mode = #tpu.pipeline_mode<synchronous>, transform_indices = @transform_3, window_bounds = array<i64: 32, 96>}, {pipeline_mode = #tpu.pipeline_mode<synchronous>, transform_indices = @transform_4, window_bounds = array<i64: 1, 96>}, {pipeline_mode = #tpu.pipeline_mode<synchronous>, transform_indices = @transform_5, window_bounds = array<i64: 32, 64>}, {pipeline_mode = #tpu.pipeline_mode<synchronous>, transform_indices = @transform_6, window_bounds = array<i64: 1, 64>}, {pipeline_mode = #tpu.pipeline_mode<synchronous>, transform_indices = @transform_7, window_bounds = array<i64: 32, 32>}, {pipeline_mode = #tpu.pipeline_mode<synchronous>, transform_indices = @transform_8, window_bounds = array<i64: 1, 32>}, {pipeline_mode = #tpu.pipeline_mode<synchronous>, transform_indices = @transform_9, window_bounds = array<i64: 1, 32>}, {pipeline_mode = #tpu.pipeline_mode<synchronous>, transform_indices = @transform_10, window_bounds = array<i64: 1, 32>}, {transform_indices = @transform_11, window_bounds = array<i64: 1, 8, 32>}]} {
    %c0 = arith.constant 0 : index
    %c0_0 = arith.constant 0 : index
    %c0_1 = arith.constant 0 : index
    %0 = vector.load %arg1[%c0, %c0_0, %c0_1] : memref<1x8x32xf32, #tpu.memory_space<vmem>>, vector<1x8x32xf32>
    %1 = vector.shape_cast %0 : vector<1x8x32xf32> to vector<8x32xf32>
    %c0_2 = arith.constant 0 : index
    %c0_3 = arith.constant 0 : index
    %c0_4 = arith.constant 0 : index
    %2 = vector.load %arg2[%c0_2, %c0_3, %c0_4] : memref<1x8x32xf32, #tpu.memory_space<vmem>>, vector<1x8x32xf32>
    %3 = vector.shape_cast %2 : vector<1x8x32xf32> to vector<8x32xf32>
    %c0_5 = arith.constant 0 : index
    %c0_6 = arith.constant 0 : index
    %4 = vector.load %arg4[%c0_5, %c0_6] : memref<32x96xf32, #tpu.memory_space<vmem>>, vector<32x96xf32>
    %cst = arith.constant dense<0.000000e+00> : vector<8x96xf32>
    %5 = tpu.matmul %1, %4, %cst {dimension_numbers = #tpu.dot_dimension_numbers<[1], [0], [0], [1], [0, 0, 1, 1], [], []>} : vector<8x32xf32>, vector<32x96xf32>, vector<8x96xf32> -> vector<8x96xf32>
    %c0_7 = arith.constant 0 : index
    %c0_8 = arith.constant 0 : index
    %6 = vector.load %arg5[%c0_7, %c0_8] : memref<1x96xf32, #tpu.memory_space<vmem>>, vector<1x96xf32>
    %7 = vector.broadcast %6 : vector<1x96xf32> to vector<8x96xf32>
    %8 = arith.addf %5, %7 : vector<8x96xf32>
    %c0_9 = arith.constant 0 : index
    %c0_10 = arith.constant 0 : index
    %9 = vector.load %arg6[%c0_9, %c0_10] : memref<32x64xf32, #tpu.memory_space<vmem>>, vector<32x64xf32>
    %cst_11 = arith.constant dense<0.000000e+00> : vector<8x64xf32>
    %10 = tpu.matmul %3, %9, %cst_11 {dimension_numbers = #tpu.dot_dimension_numbers<[1], [0], [0], [1], [0, 0, 1, 1], [], []>} : vector<8x32xf32>, vector<32x64xf32>, vector<8x64xf32> -> vector<8x64xf32>
    %c0_12 = arith.constant 0 : index
    %c0_13 = arith.constant 0 : index
    %11 = vector.load %arg7[%c0_12, %c0_13] : memref<1x64xf32, #tpu.memory_space<vmem>>, vector<1x64xf32>
    %12 = vector.broadcast %11 : vector<1x64xf32> to vector<8x64xf32>
    %13 = arith.addf %10, %12 : vector<8x64xf32>
    %14 = vector.extract_strided_slice %8 {offsets = [0, 0], sizes = [8, 32], strides = [1, 1]} : vector<8x96xf32> to vector<8x32xf32>
    %15 = vector.extract_strided_slice %8 {offsets = [0, 32], sizes = [8, 32], strides = [1, 1]} : vector<8x96xf32> to vector<8x32xf32>
    %16 = vector.extract_strided_slice %13 {offsets = [0, 0], sizes = [8, 32], strides = [1, 1]} : vector<8x64xf32> to vector<8x32xf32>
    %17 = arith.addf %15, %16 : vector<8x32xf32>
    %18 = vector.extract_strided_slice %8 {offsets = [0, 64], sizes = [8, 32], strides = [1, 1]} : vector<8x96xf32> to vector<8x32xf32>
    %19 = vector.extract_strided_slice %13 {offsets = [0, 32], sizes = [8, 32], strides = [1, 1]} : vector<8x64xf32> to vector<8x32xf32>
    %20 = arith.addf %18, %19 : vector<8x32xf32>
    %c0_14 = arith.constant 0 : index
    %c0_15 = arith.constant 0 : index
    %c0_16 = arith.constant 0 : index
    %c0_17 = arith.constant 0 : index
    %21 = vector.load %arg3[%c0_14, %c0_15, %c0_16, %c0_17] : memref<1x1x1x8xf32, #tpu.memory_space<vmem>>, vector<1x1x1x8xf32>
    %22 = vector.shape_cast %21 : vector<1x1x1x8xf32> to vector<1x8xf32>
    %23 = vector.extract_strided_slice %14 {offsets = [0, 0], sizes = [8, 8], strides = [1, 1]} : vector<8x32xf32> to vector<8x8xf32>
    %24 = vector.extract_strided_slice %17 {offsets = [0, 0], sizes = [8, 8], strides = [1, 1]} : vector<8x32xf32> to vector<8x8xf32>
    %25 = vector.extract_strided_slice %20 {offsets = [0, 0], sizes = [8, 8], strides = [1, 1]} : vector<8x32xf32> to vector<8x8xf32>
    %cst_18 = arith.constant dense<0.000000e+00> : vector<8x8xf32>
    %26 = tpu.matmul %23, %24, %cst_18 {dimension_numbers = #tpu.dot_dimension_numbers<[1], [1], [0], [0], [0, 0, 1, 0], [], []>} : vector<8x8xf32>, vector<8x8xf32>, vector<8x8xf32> -> vector<8x8xf32>
    %cst_19 = arith.constant 0.353553385 : f32
    %27 = vector.broadcast %cst_19 : f32 to vector<8x8xf32>
    %28 = arith.mulf %26, %27 : vector<8x8xf32>
    %29 = vector.broadcast %22 : vector<1x8xf32> to vector<8x8xf32>
    %30 = arith.addf %28, %29 : vector<8x8xf32>
    %cst_20 = arith.constant dense<0xFF800000> : vector<8xf32>
    %31 = vector.multi_reduction <maximumf>, %30, %cst_20 [1] : vector<8x8xf32> to vector<8xf32>
    %32 = vector.shape_cast %31 : vector<8xf32> to vector<8x1xf32>
    %33 = vector.broadcast %32 : vector<8x1xf32> to vector<8x8xf32>
    %34 = arith.subf %30, %33 : vector<8x8xf32>
    %35 = math.exp %34 : vector<8x8xf32>
    %cst_21 = arith.constant dense<0.000000e+00> : vector<8xf32>
    %36 = vector.multi_reduction <add>, %35, %cst_21 [1] : vector<8x8xf32> to vector<8xf32>
    %37 = vector.shape_cast %36 : vector<8xf32> to vector<8x1xf32>
    %38 = tpu.reciprocal %37 {approx = true} : vector<8x1xf32> -> vector<8x1xf32>
    %39 = vector.broadcast %38 : vector<8x1xf32> to vector<8x8xf32>
    %40 = arith.mulf %35, %39 : vector<8x8xf32>
    %cst_22 = arith.constant dense<0.000000e+00> : vector<8x8xf32>
    %41 = tpu.matmul %40, %25, %cst_22 {dimension_numbers = #tpu.dot_dimension_numbers<[1], [0], [0], [1], [0, 0, 1, 1], [], []>} : vector<8x8xf32>, vector<8x8xf32>, vector<8x8xf32> -> vector<8x8xf32>
    %42 = vector.extract_strided_slice %14 {offsets = [0, 8], sizes = [8, 8], strides = [1, 1]} : vector<8x32xf32> to vector<8x8xf32>
    %43 = vector.extract_strided_slice %17 {offsets = [0, 8], sizes = [8, 8], strides = [1, 1]} : vector<8x32xf32> to vector<8x8xf32>
    %44 = vector.extract_strided_slice %20 {offsets = [0, 8], sizes = [8, 8], strides = [1, 1]} : vector<8x32xf32> to vector<8x8xf32>
    %cst_23 = arith.constant dense<0.000000e+00> : vector<8x8xf32>
    %45 = tpu.matmul %42, %43, %cst_23 {dimension_numbers = #tpu.dot_dimension_numbers<[1], [1], [0], [0], [0, 0, 1, 0], [], []>} : vector<8x8xf32>, vector<8x8xf32>, vector<8x8xf32> -> vector<8x8xf32>
    %cst_24 = arith.constant 0.353553385 : f32
    %46 = vector.broadcast %cst_24 : f32 to vector<8x8xf32>
    %47 = arith.mulf %45, %46 : vector<8x8xf32>
    %48 = vector.broadcast %22 : vector<1x8xf32> to vector<8x8xf32>
    %49 = arith.addf %47, %48 : vector<8x8xf32>
    %cst_25 = arith.constant dense<0xFF800000> : vector<8xf32>
    %50 = vector.multi_reduction <maximumf>, %49, %cst_25 [1] : vector<8x8xf32> to vector<8xf32>
    %51 = vector.shape_cast %50 : vector<8xf32> to vector<8x1xf32>
    %52 = vector.broadcast %51 : vector<8x1xf32> to vector<8x8xf32>
    %53 = arith.subf %49, %52 : vector<8x8xf32>
    %54 = math.exp %53 : vector<8x8xf32>
    %cst_26 = arith.constant dense<0.000000e+00> : vector<8xf32>
    %55 = vector.multi_reduction <add>, %54, %cst_26 [1] : vector<8x8xf32> to vector<8xf32>
    %56 = vector.shape_cast %55 : vector<8xf32> to vector<8x1xf32>
    %57 = tpu.reciprocal %56 {approx = true} : vector<8x1xf32> -> vector<8x1xf32>
    %58 = vector.broadcast %57 : vector<8x1xf32> to vector<8x8xf32>
    %59 = arith.mulf %54, %58 : vector<8x8xf32>
    %cst_27 = arith.constant dense<0.000000e+00> : vector<8x8xf32>
    %60 = tpu.matmul %59, %44, %cst_27 {dimension_numbers = #tpu.dot_dimension_numbers<[1], [0], [0], [1], [0, 0, 1, 1], [], []>} : vector<8x8xf32>, vector<8x8xf32>, vector<8x8xf32> -> vector<8x8xf32>
    %61 = vector.extract_strided_slice %14 {offsets = [0, 16], sizes = [8, 8], strides = [1, 1]} : vector<8x32xf32> to vector<8x8xf32>
    %62 = vector.extract_strided_slice %17 {offsets = [0, 16], sizes = [8, 8], strides = [1, 1]} : vector<8x32xf32> to vector<8x8xf32>
    %63 = vector.extract_strided_slice %20 {offsets = [0, 16], sizes = [8, 8], strides = [1, 1]} : vector<8x32xf32> to vector<8x8xf32>
    %cst_28 = arith.constant dense<0.000000e+00> : vector<8x8xf32>
    %64 = tpu.matmul %61, %62, %cst_28 {dimension_numbers = #tpu.dot_dimension_numbers<[1], [1], [0], [0], [0, 0, 1, 0], [], []>} : vector<8x8xf32>, vector<8x8xf32>, vector<8x8xf32> -> vector<8x8xf32>
    %cst_29 = arith.constant 0.353553385 : f32
    %65 = vector.broadcast %cst_29 : f32 to vector<8x8xf32>
    %66 = arith.mulf %64, %65 : vector<8x8xf32>
    %67 = vector.broadcast %22 : vector<1x8xf32> to vector<8x8xf32>
    %68 = arith.addf %66, %67 : vector<8x8xf32>
    %cst_30 = arith.constant dense<0xFF800000> : vector<8xf32>
    %69 = vector.multi_reduction <maximumf>, %68, %cst_30 [1] : vector<8x8xf32> to vector<8xf32>
    %70 = vector.shape_cast %69 : vector<8xf32> to vector<8x1xf32>
    %71 = vector.broadcast %70 : vector<8x1xf32> to vector<8x8xf32>
    %72 = arith.subf %68, %71 : vector<8x8xf32>
    %73 = math.exp %72 : vector<8x8xf32>
    %cst_31 = arith.constant dense<0.000000e+00> : vector<8xf32>
    %74 = vector.multi_reduction <add>, %73, %cst_31 [1] : vector<8x8xf32> to vector<8xf32>
    %75 = vector.shape_cast %74 : vector<8xf32> to vector<8x1xf32>
    %76 = tpu.reciprocal %75 {approx = true} : vector<8x1xf32> -> vector<8x1xf32>
    %77 = vector.broadcast %76 : vector<8x1xf32> to vector<8x8xf32>
    %78 = arith.mulf %73, %77 : vector<8x8xf32>
    %cst_32 = arith.constant dense<0.000000e+00> : vector<8x8xf32>
    %79 = tpu.matmul %78, %63, %cst_32 {dimension_numbers = #tpu.dot_dimension_numbers<[1], [0], [0], [1], [0, 0, 1, 1], [], []>} : vector<8x8xf32>, vector<8x8xf32>, vector<8x8xf32> -> vector<8x8xf32>
    %80 = vector.extract_strided_slice %14 {offsets = [0, 24], sizes = [8, 8], strides = [1, 1]} : vector<8x32xf32> to vector<8x8xf32>
    %81 = vector.extract_strided_slice %17 {offsets = [0, 24], sizes = [8, 8], strides = [1, 1]} : vector<8x32xf32> to vector<8x8xf32>
    %82 = vector.extract_strided_slice %20 {offsets = [0, 24], sizes = [8, 8], strides = [1, 1]} : vector<8x32xf32> to vector<8x8xf32>
    %cst_33 = arith.constant dense<0.000000e+00> : vector<8x8xf32>
    %83 = tpu.matmul %80, %81, %cst_33 {dimension_numbers = #tpu.dot_dimension_numbers<[1], [1], [0], [0], [0, 0, 1, 0], [], []>} : vector<8x8xf32>, vector<8x8xf32>, vector<8x8xf32> -> vector<8x8xf32>
    %cst_34 = arith.constant 0.353553385 : f32
    %84 = vector.broadcast %cst_34 : f32 to vector<8x8xf32>
    %85 = arith.mulf %83, %84 : vector<8x8xf32>
    %86 = vector.broadcast %22 : vector<1x8xf32> to vector<8x8xf32>
    %87 = arith.addf %85, %86 : vector<8x8xf32>
    %cst_35 = arith.constant dense<0xFF800000> : vector<8xf32>
    %88 = vector.multi_reduction <maximumf>, %87, %cst_35 [1] : vector<8x8xf32> to vector<8xf32>
    %89 = vector.shape_cast %88 : vector<8xf32> to vector<8x1xf32>
    %90 = vector.broadcast %89 : vector<8x1xf32> to vector<8x8xf32>
    %91 = arith.subf %87, %90 : vector<8x8xf32>
    %92 = math.exp %91 : vector<8x8xf32>
    %cst_36 = arith.constant dense<0.000000e+00> : vector<8xf32>
    %93 = vector.multi_reduction <add>, %92, %cst_36 [1] : vector<8x8xf32> to vector<8xf32>
    %94 = vector.shape_cast %93 : vector<8xf32> to vector<8x1xf32>
    %95 = tpu.reciprocal %94 {approx = true} : vector<8x1xf32> -> vector<8x1xf32>
    %96 = vector.broadcast %95 : vector<8x1xf32> to vector<8x8xf32>
    %97 = arith.mulf %92, %96 : vector<8x8xf32>
    %cst_37 = arith.constant dense<0.000000e+00> : vector<8x8xf32>
    %98 = tpu.matmul %97, %82, %cst_37 {dimension_numbers = #tpu.dot_dimension_numbers<[1], [0], [0], [1], [0, 0, 1, 1], [], []>} : vector<8x8xf32>, vector<8x8xf32>, vector<8x8xf32> -> vector<8x8xf32>
    %99 = tpu.concatenate %41, %60, %79, %98 in 1 : vector<8x8xf32>, vector<8x8xf32>, vector<8x8xf32>, vector<8x8xf32> -> vector<8x32xf32>
    %c0_38 = arith.constant 0 : index
    %c0_39 = arith.constant 0 : index
    %100 = vector.load %arg8[%c0_38, %c0_39] : memref<32x32xf32, #tpu.memory_space<vmem>>, vector<32x32xf32>
    %cst_40 = arith.constant dense<0.000000e+00> : vector<8x32xf32>
    %101 = tpu.matmul %99, %100, %cst_40 {dimension_numbers = #tpu.dot_dimension_numbers<[1], [0], [0], [1], [0, 0, 1, 1], [], []>} : vector<8x32xf32>, vector<32x32xf32>, vector<8x32xf32> -> vector<8x32xf32>
    %c0_41 = arith.constant 0 : index
    %c0_42 = arith.constant 0 : index
    %102 = vector.load %arg9[%c0_41, %c0_42] : memref<1x32xf32, #tpu.memory_space<vmem>>, vector<1x32xf32>
    %103 = vector.broadcast %102 : vector<1x32xf32> to vector<8x32xf32>
    %104 = arith.addf %101, %103 : vector<8x32xf32>
    %105 = arith.addf %104, %1 : vector<8x32xf32>
    %c0_43 = arith.constant 0 : index
    %c0_44 = arith.constant 0 : index
    %106 = vector.load %arg10[%c0_43, %c0_44] : memref<1x32xf32, #tpu.memory_space<vmem>>, vector<1x32xf32>
    %c0_45 = arith.constant 0 : index
    %c0_46 = arith.constant 0 : index
    %107 = vector.load %arg11[%c0_45, %c0_46] : memref<1x32xf32, #tpu.memory_space<vmem>>, vector<1x32xf32>
    %cst_47 = arith.constant dense<0.000000e+00> : vector<8xf32>
    %108 = vector.multi_reduction <add>, %105, %cst_47 [1] : vector<8x32xf32> to vector<8xf32>
    %109 = vector.shape_cast %108 : vector<8xf32> to vector<8x1xf32>
    %cst_48 = arith.constant 3.200000e+01 : f32
    %110 = vector.broadcast %cst_48 : f32 to vector<8x1xf32>
    %111 = arith.divf %109, %110 : vector<8x1xf32>
    %112 = vector.broadcast %111 : vector<8x1xf32> to vector<8x32xf32>
    %113 = arith.subf %105, %112 : vector<8x32xf32>
    %114 = arith.mulf %113, %113 : vector<8x32xf32>
    %cst_49 = arith.constant dense<0.000000e+00> : vector<8xf32>
    %115 = vector.multi_reduction <add>, %114, %cst_49 [1] : vector<8x32xf32> to vector<8xf32>
    %116 = vector.shape_cast %115 : vector<8xf32> to vector<8x1xf32>
    %cst_50 = arith.constant 3.200000e+01 : f32
    %117 = vector.broadcast %cst_50 : f32 to vector<8x1xf32>
    %118 = arith.divf %116, %117 : vector<8x1xf32>
    %cst_51 = arith.constant 9.99999996E-13 : f32
    %119 = vector.broadcast %cst_51 : f32 to vector<8x1xf32>
    %120 = arith.addf %118, %119 : vector<8x1xf32>
    %121 = math.rsqrt %120 : vector<8x1xf32>
    %122 = vector.broadcast %121 : vector<8x1xf32> to vector<8x32xf32>
    %123 = arith.mulf %113, %122 : vector<8x32xf32>
    %124 = vector.broadcast %106 : vector<1x32xf32> to vector<8x32xf32>
    %125 = arith.mulf %123, %124 : vector<8x32xf32>
    %126 = vector.broadcast %107 : vector<1x32xf32> to vector<8x32xf32>
    %127 = arith.addf %125, %126 : vector<8x32xf32>
    %c0_52 = arith.constant 0 : index
    %c0_53 = arith.constant 0 : index
    %c0_54 = arith.constant 0 : index
    %128 = vector.load %arg12[%c0_52, %c0_53, %c0_54] : memref<1x8x32xf32, #tpu.memory_space<vmem>>, vector<1x8x32xf32>
    %129 = vector.shape_cast %128 : vector<1x8x32xf32> to vector<8x32xf32>
    %130 = vector.shape_cast %127 : vector<8x32xf32> to vector<1x8x32xf32>
    tpu.vector_store %arg12[%c0_52, %c0_53, %c0_54], %130 {strides = array<i32>} : memref<1x8x32xf32, #tpu.memory_space<vmem>>, vector<1x8x32xf32>,
    return
  }
  func.func @transform_0(%arg0: i32) -> (i32, i32, i32) {
    %c0_i32 = arith.constant 0 : i32
    %c0_i32_0 = arith.constant 0 : i32
    %c0_i32_1 = arith.constant 0 : i32
    return %arg0, %c0_i32, %c0_i32_0 : i32, i32, i32
  }
  func.func @transform_1(%arg0: i32) -> (i32, i32, i32) {
    %c0_i32 = arith.constant 0 : i32
    %c0_i32_0 = arith.constant 0 : i32
    %c0_i32_1 = arith.constant 0 : i32
    return %arg0, %c0_i32, %c0_i32_0 : i32, i32, i32
  }
  func.func @transform_2(%arg0: i32) -> (i32, i32, i32, i32) {
    %c0_i32 = arith.constant 0 : i32
    %c0_i32_0 = arith.constant 0 : i32
    %c0_i32_1 = arith.constant 0 : i32
    %c0_i32_2 = arith.constant 0 : i32
    return %arg0, %c0_i32, %c0_i32_0, %c0_i32_1 : i32, i32, i32, i32
  }
  func.func @transform_3(%arg0: i32) -> (i32, i32) {
    %c0_i32 = arith.constant 0 : i32
    %c0_i32_0 = arith.constant 0 : i32
    %c0_i32_1 = arith.constant 0 : i32
    return %c0_i32, %c0_i32_0 : i32, i32
  }
  func.func @transform_4(%arg0: i32) -> (i32, i32) {
    %c0_i32 = arith.constant 0 : i32
    %c0_i32_0 = arith.constant 0 : i32
    %c0_i32_1 = arith.constant 0 : i32
    return %c0_i32, %c0_i32_0 : i32, i32
  }
  func.func @transform_5(%arg0: i32) -> (i32, i32) {
    %c0_i32 = arith.constant 0 : i32
    %c0_i32_0 = arith.constant 0 : i32
    %c0_i32_1 = arith.constant 0 : i32
    return %c0_i32, %c0_i32_0 : i32, i32
  }
  func.func @transform_6(%arg0: i32) -> (i32, i32) {
    %c0_i32 = arith.constant 0 : i32
    %c0_i32_0 = arith.constant 0 : i32
    %c0_i32_1 = arith.constant 0 : i32
    return %c0_i32, %c0_i32_0 : i32, i32
  }
  func.func @transform_7(%arg0: i32) -> (i32, i32) {
    %c0_i32 = arith.constant 0 : i32
    %c0_i32_0 = arith.constant 0 : i32
    %c0_i32_1 = arith.constant 0 : i32
    return %c0_i32, %c0_i32_0 : i32, i32
  }
  func.func @transform_8(%arg0: i32) -> (i32, i32) {
    %c0_i32 = arith.constant 0 : i32
    %c0_i32_0 = arith.constant 0 : i32
    %c0_i32_1 = arith.constant 0 : i32
    return %c0_i32, %c0_i32_0 : i32, i32
  }
  func.func @transform_9(%arg0: i32) -> (i32, i32) {
    %c0_i32 = arith.constant 0 : i32
    %c0_i32_0 = arith.constant 0 : i32
    %c0_i32_1 = arith.constant 0 : i32
    return %c0_i32, %c0_i32_0 : i32, i32
  }
  func.func @transform_10(%arg0: i32) -> (i32, i32) {
    %c0_i32 = arith.constant 0 : i32
    %c0_i32_0 = arith.constant 0 : i32
    %c0_i32_1 = arith.constant 0 : i32
    return %c0_i32, %c0_i32_0 : i32, i32
  }
  func.func @transform_11(%arg0: i32) -> (i32, i32, i32) {
    %c0_i32 = arith.constant 0 : i32
    %c0_i32_0 = arith.constant 0 : i32
    %c0_i32_1 = arith.constant 0 : i32
    return %arg0, %c0_i32, %c0_i32_0 : i32, i32, i32
  }
}

</mosaic_0001>

<llo_original>
// kernel: tpu_custom_call.1
$region0: #{tpu_custom_call.1}
  #allocation0 [shape = 'u32[]', space=smem, size = 0x4, offset = 0x4, fixed_abs, tag = 'smem constant byte address 0x4 - core index']
  #allocation1 [shape = 'u32[144,128]{1,0:T(1,128)}', space=vmem, size = 0x12000, scoped, tag = 'internal scratch']
  %s0 = inlined_call_operand.hbm [shape: f32[2,8,32], index: 0, kind: input, shape index: {}]
  %s1 = inlined_call_operand.hbm [shape: f32[2,8,32], index: 1, kind: input, shape index: {}]
  %s2 = inlined_call_operand.vmem [shape: f32[2,1,1,8], index: 2, kind: input, shape index: {}]
  %s3 = inlined_call_operand.hbm [shape: f32[32,96], index: 3, kind: input, shape index: {}]
  %s4 = inlined_call_operand.vmem [shape: f32[1,96], index: 4, kind: input, shape index: {}]
  %s5 = inlined_call_operand.hbm [shape: f32[32,64], index: 5, kind: input, shape index: {}]
  %s6 = inlined_call_operand.vmem [shape: f32[1,64], index: 6, kind: input, shape index: {}]
  %s7 = inlined_call_operand.hbm [shape: f32[32,32], index: 7, kind: input, shape index: {}]
  %s8 = inlined_call_operand.vmem [shape: f32[1,32], index: 8, kind: input, shape index: {}]
  %s9 = inlined_call_operand.vmem [shape: f32[1,32], index: 9, kind: input, shape index: {}]
  %s10 = inlined_call_operand.vmem [shape: f32[1,32], index: 10, kind: input, shape index: {}]
  %s11 = inlined_call_operand.hbm [shape: f32[2,8,32], index: 11, kind: output, shape index: {}]
  %s12 = sld [smem:[#allocation0]]
  $region97: #{tpu_custom_call.1} parent=0
    _
  %s14 = ssub.s32 1, %s12
  %s15 = scalar_select 0, %s14, %s12
  $region1: #{tpu_custom_call.1} parent=0
    #allocation2 [shape = 'u8[8192]{0}', space=vmem, size = 0x2000, scoped, tag = 'input window, operand 0']
    #allocation3 [shape = 's32[2]{0}', space=sflag, size = 0x8, scoped, tag = 'scoped memory for tpu_custom_call.1']
    #allocation4 [shape = 's32[2]{0}', space=sflag, size = 0x8, scoped, tag = 'scoped memory for tpu_custom_call.1']
    #allocation5 [shape = 'u8[8192]{0}', space=vmem, size = 0x2000, scoped, tag = 'input window, operand 1']
    #allocation6 [shape = 's32[2]{0}', space=sflag, size = 0x8, scoped, tag = 'scoped memory for tpu_custom_call.1']
    #allocation7 [shape = 'u8[16384]{0}', space=vmem, size = 0x4000, scoped, tag = 'input window, operand 3, single buffered']
    #allocation8 [shape = 'u8[16384]{0}', space=vmem, size = 0x4000, scoped, tag = 'input window, operand 5, single buffered']
    #allocation9 [shape = 's32[1]{0}', space=sflag, size = 0x4, scoped, tag = 'scoped memory for tpu_custom_call.1']
    #allocation10 [shape = 'u8[16384]{0}', space=vmem, size = 0x4000, scoped, tag = 'input window, operand 7, single buffered']
    #allocation11 [shape = 'u8[8192]{0}', space=vmem, size = 0x2000, scoped, tag = 'output window, operand 0']
    %16 = vsyncpa [#allocation3], 0
    %s17 = scalar_lea.sflag [#allocation3], 1
    %18 = vsyncpa %s17, 0
    %19 = vsyncpa [#allocation6], 0
    %s20 = scalar_lea.sflag [#allocation6], 1
    %21 = vsyncpa %s20, 0
    %22 = vsyncpa [#allocation9], 0
    %23 = vsyncpa [#allocation4], 0
    %s24 = scalar_lea.sflag [#allocation4], 1
    %25 = vsyncpa %s24, 0
    loop: start=0, step=1, limit=4
    $region2: #{tpu_custom_call.1} parent=1 // loop_pre_header
      _
    $region3: #{tpu_custom_call.1} parent=1 // loop_header
      %s27 = sphi 0, %s31
      %p28 = scmp.ge.s32.totalorder %s27, 4
      %s37 = sphi 0, %s39
      %s40 = sphi 0, %s37
      %s41 = sphi 0, %s40
      %s57 = sphi 0, %s41
      %s63 = sphi 0, %s65
      %s66 = sphi 0, %s63
      %s67 = sphi 0, %s66
      %s83 = sphi 0, %s67
      %s89 = sphi 0, %s91
      %s92 = sphi 0, %s89
      %s93 = sphi 0, %s92
      %s109 = sphi 0, %s93
      %s113 = sphi 0, %s113
      %s115 = sphi 0, %s113
      %s116 = sphi 0, %s115
      %s130 = sphi 0, %s116
      %s134 = sphi 0, %s134
      %s136 = sphi 0, %s134
      %s137 = sphi 0, %s136
      %s151 = sphi 0, %s137
      %s155 = sphi 0, %s155
      %s157 = sphi 0, %s155
      %s158 = sphi 0, %s157
      %s172 = sphi 0, %s158
      %s176 = sphi 0, %s176
      %s178 = sphi 0, %s176
      %s179 = sphi 0, %s178
      %s193 = sphi 0, %s179
      %s197 = sphi 0, %s197
      %s199 = sphi 0, %s197
      %s200 = sphi 0, %s199
      %s214 = sphi 0, %s200
      %s218 = sphi 0, %s218
      %s220 = sphi 0, %s218
      %s221 = sphi 0, %s220
      %s235 = sphi 0, %s221
      %s239 = sphi 0, %s239
      %s241 = sphi 0, %s239
      %s242 = sphi 0, %s241
      %s256 = sphi 0, %s242
      %s260 = sphi 0, %s260
      %s262 = sphi 0, %s260
      %s263 = sphi 0, %s262
      %s277 = sphi 0, %s263
      %s283 = sphi 0, %s285
      %s286 = sphi 0, %s283
      %s287 = sphi 0, %s286
      %s303 = sphi 0, %s287
    $region4: #{tpu_custom_call.1} parent=1 // loop_header_branch
      %30 = sbr.rel (%p28) target = $region8
    $region5: #{tpu_custom_call.1} parent=1 // loop_body
      %s32 = ssub.s32 %s27, 1
      %s33 = ssub.s32 %s27, 2
      %s34 = sadd.s32 %s27, 1
      %s35 = ssub.s32 %s27, %s34
      %p36 = scmp.eq.s32.totalorder %s35, 0
      %s38 = sadd.s32 %s37, 1
      %s39 = scalar_select %p36, %s37, %s38
      %p42 = pneg %p36
      %p43 = scmp.eq.s32.totalorder %s27, 1
      %p44 = por %p42, %p43
      %p45 = scmp.ne.s32.totalorder %s37, %s40
      %p46 = scmp.eq.s32.totalorder %s27, 0
      %p47 = por %p45, %p46
      %p48 = scmp.ne.s32.totalorder %s37, %s40
      %p49 = scmp.eq.s32.totalorder %s32, 1
      %p50 = por %p48, %p49
      %p51 = scmp.ne.s32.totalorder %s40, %s41
      %p52 = scmp.eq.s32.totalorder %s32, 0
      %p53 = por %p51, %p52
      %p54 = scmp.ne.s32.totalorder %s40, %s41
      %p55 = scmp.eq.s32.totalorder %s33, 1
      %p56 = por %p54, %p55
      %p58 = scmp.ne.s32.totalorder %s41, %s57
      %p59 = scmp.eq.s32.totalorder %s33, 0
      %p60 = por %p58, %p59
      %s61 = ssub.s32 %s27, %s34
      %p62 = scmp.eq.s32.totalorder %s61, 0
      %s64 = sadd.s32 %s63, 1
      %s65 = scalar_select %p62, %s63, %s64
      %p68 = pneg %p62
      %p69 = scmp.eq.s32.totalorder %s27, 1
      %p70 = por %p68, %p69
      %p71 = scmp.ne.s32.totalorder %s63, %s66
      %p72 = scmp.eq.s32.totalorder %s27, 0
      %p73 = por %p71, %p72
      %p74 = scmp.ne.s32.totalorder %s63, %s66
      %p75 = scmp.eq.s32.totalorder %s32, 1
      %p76 = por %p74, %p75
      %p77 = scmp.ne.s32.totalorder %s66, %s67
      %p78 = scmp.eq.s32.totalorder %s32, 0
      %p79 = por %p77, %p78
      %p80 = scmp.ne.s32.totalorder %s66, %s67
      %p81 = scmp.eq.s32.totalorder %s33, 1
      %p82 = por %p80, %p81
      %p84 = scmp.ne.s32.totalorder %s67, %s83
      %p85 = scmp.eq.s32.totalorder %s33, 0
      %p86 = por %p84, %p85
      %s87 = ssub.s32 %s27, %s34
      %p88 = scmp.eq.s32.totalorder %s87, 0
      %s90 = sadd.s32 %s89, 1
      %s91 = scalar_select %p88, %s89, %s90
      %p94 = pneg %p88
      %p95 = scmp.eq.s32.totalorder %s27, 1
      %p96 = por %p94, %p95
      %p97 = scmp.ne.s32.totalorder %s89, %s92
      %p98 = scmp.eq.s32.totalorder %s27, 0
      %p99 = por %p97, %p98
      %p100 = scmp.ne.s32.totalorder %s89, %s92
      %p101 = scmp.eq.s32.totalorder %s32, 1
      %p102 = por %p100, %p101
      %p103 = scmp.ne.s32.totalorder %s92, %s93
      %p104 = scmp.eq.s32.totalorder %s32, 0
      %p105 = por %p103, %p104
      %p106 = scmp.ne.s32.totalorder %s92, %s93
      %p107 = scmp.eq.s32.totalorder %s33, 1
      %p108 = por %p106, %p107
      %p110 = scmp.ne.s32.totalorder %s93, %s109
      %p111 = scmp.eq.s32.totalorder %s33, 0
      %p112 = por %p110, %p111
      %s114 = sadd.s32 %s113, 1
      %p117 = scmp.eq.s32.totalorder %s27, 1
      %p118 = scmp.ne.s32.totalorder %s113, %s115
      %p119 = scmp.eq.s32.totalorder %s27, 0
      %p120 = por %p118, %p119
      %p121 = scmp.ne.s32.totalorder %s113, %s115
      %p122 = scmp.eq.s32.totalorder %s32, 1
      %p123 = por %p121, %p122
      %p124 = scmp.ne.s32.totalorder %s115, %s116
      %p125 = scmp.eq.s32.totalorder %s32, 0
      %p126 = por %p124, %p125
      %p127 = scmp.ne.s32.totalorder %s115, %s116
      %p128 = scmp.eq.s32.totalorder %s33, 1
      %p129 = por %p127, %p128
      %p131 = scmp.ne.s32.totalorder %s116, %s130
      %p132 = scmp.eq.s32.totalorder %s33, 0
      %p133 = por %p131, %p132
      %s135 = sadd.s32 %s134, 1
      %p138 = scmp.eq.s32.totalorder %s27, 1
      %p139 = scmp.ne.s32.totalorder %s134, %s136
      %p140 = scmp.eq.s32.totalorder %s27, 0
      %p141 = por %p139, %p140
      %p142 = scmp.ne.s32.totalorder %s134, %s136
      %p143 = scmp.eq.s32.totalorder %s32, 1
      %p144 = por %p142, %p143
      %p145 = scmp.ne.s32.totalorder %s136, %s137
      %p146 = scmp.eq.s32.totalorder %s32, 0
      %p147 = por %p145, %p146
      %p148 = scmp.ne.s32.totalorder %s136, %s137
      %p149 = scmp.eq.s32.totalorder %s33, 1
      %p150 = por %p148, %p149
      %p152 = scmp.ne.s32.totalorder %s137, %s151
      %p153 = scmp.eq.s32.totalorder %s33, 0
      %p154 = por %p152, %p153
      %s156 = sadd.s32 %s155, 1
      %p159 = scmp.eq.s32.totalorder %s27, 1
      %p160 = scmp.ne.s32.totalorder %s155, %s157
      %p161 = scmp.eq.s32.totalorder %s27, 0
      %p162 = por %p160, %p161
      %p163 = scmp.ne.s32.totalorder %s155, %s157
      %p164 = scmp.eq.s32.totalorder %s32, 1
      %p165 = por %p163, %p164
      %p166 = scmp.ne.s32.totalorder %s157, %s158
      %p167 = scmp.eq.s32.totalorder %s32, 0
      %p168 = por %p166, %p167
      %p169 = scmp.ne.s32.totalorder %s157, %s158
      %p170 = scmp.eq.s32.totalorder %s33, 1
      %p171 = por %p169, %p170
      %p173 = scmp.ne.s32.totalorder %s158, %s172
      %p174 = scmp.eq.s32.totalorder %s33, 0
      %p175 = por %p173, %p174
      %s177 = sadd.s32 %s176, 1
      %p180 = scmp.eq.s32.totalorder %s27, 1
      %p181 = scmp.ne.s32.totalorder %s176, %s178
      %p182 = scmp.eq.s32.totalorder %s27, 0
      %p183 = por %p181, %p182
      %p184 = scmp.ne.s32.totalorder %s176, %s178
      %p185 = scmp.eq.s32.totalorder %s32, 1
      %p186 = por %p184, %p185
      %p187 = scmp.ne.s32.totalorder %s178, %s179
      %p188 = scmp.eq.s32.totalorder %s32, 0
      %p189 = por %p187, %p188
      %p190 = scmp.ne.s32.totalorder %s178, %s179
      %p191 = scmp.eq.s32.totalorder %s33, 1
      %p192 = por %p190, %p191
      %p194 = scmp.ne.s32.totalorder %s179, %s193
      %p195 = scmp.eq.s32.totalorder %s33, 0
      %p196 = por %p194, %p195
      %s198 = sadd.s32 %s197, 1
      %p201 = scmp.eq.s32.totalorder %s27, 1
      %p202 = scmp.ne.s32.totalorder %s197, %s199
      %p203 = scmp.eq.s32.totalorder %s27, 0
      %p204 = por %p202, %p203
      %p205 = scmp.ne.s32.totalorder %s197, %s199
      %p206 = scmp.eq.s32.totalorder %s32, 1
      %p207 = por %p205, %p206
      %p208 = scmp.ne.s32.totalorder %s199, %s200
      %p209 = scmp.eq.s32.totalorder %s32, 0
      %p210 = por %p208, %p209
      %p211 = scmp.ne.s32.totalorder %s199, %s200
      %p212 = scmp.eq.s32.totalorder %s33, 1
      %p213 = por %p211, %p212
      %p215 = scmp.ne.s32.totalorder %s200, %s214
      %p216 = scmp.eq.s32.totalorder %s33, 0
      %p217 = por %p215, %p216
      %s219 = sadd.s32 %s218, 1
      %p222 = scmp.eq.s32.totalorder %s27, 1
      %p223 = scmp.ne.s32.totalorder %s218, %s220
      %p224 = scmp.eq.s32.totalorder %s27, 0
      %p225 = por %p223, %p224
      %p226 = scmp.ne.s32.totalorder %s218, %s220
      %p227 = scmp.eq.s32.totalorder %s32, 1
      %p228 = por %p226, %p227
      %p229 = scmp.ne.s32.totalorder %s220, %s221
      %p230 = scmp.eq.s32.totalorder %s32, 0
      %p231 = por %p229, %p230
      %p232 = scmp.ne.s32.totalorder %s220, %s221
      %p233 = scmp.eq.s32.totalorder %s33, 1
      %p234 = por %p232, %p233
      %p236 = scmp.ne.s32.totalorder %s221, %s235
      %p237 = scmp.eq.s32.totalorder %s33, 0
      %p238 = por %p236, %p237
      %s240 = sadd.s32 %s239, 1
      %p243 = scmp.eq.s32.totalorder %s27, 1
      %p244 = scmp.ne.s32.totalorder %s239, %s241
      %p245 = scmp.eq.s32.totalorder %s27, 0
      %p246 = por %p244, %p245
      %p247 = scmp.ne.s32.totalorder %s239, %s241
      %p248 = scmp.eq.s32.totalorder %s32, 1
      %p249 = por %p247, %p248
      %p250 = scmp.ne.s32.totalorder %s241, %s242
      %p251 = scmp.eq.s32.totalorder %s32, 0
      %p252 = por %p250, %p251
      %p253 = scmp.ne.s32.totalorder %s241, %s242
      %p254 = scmp.eq.s32.totalorder %s33, 1
      %p255 = por %p253, %p254
      %p257 = scmp.ne.s32.totalorder %s242, %s256
      %p258 = scmp.eq.s32.totalorder %s33, 0
      %p259 = por %p257, %p258
      %s261 = sadd.s32 %s260, 1
      %p264 = scmp.eq.s32.totalorder %s27, 1
      %p265 = scmp.ne.s32.totalorder %s260, %s262
      %p266 = scmp.eq.s32.totalorder %s27, 0
      %p267 = por %p265, %p266
      %p268 = scmp.ne.s32.totalorder %s260, %s262
      %p269 = scmp.eq.s32.totalorder %s32, 1
      %p270 = por %p268, %p269
      %p271 = scmp.ne.s32.totalorder %s262, %s263
      %p272 = scmp.eq.s32.totalorder %s32, 0
      %p273 = por %p271, %p272
      %p274 = scmp.ne.s32.totalorder %s262, %s263
      %p275 = scmp.eq.s32.totalorder %s33, 1
      %p276 = por %p274, %p275
      %p278 = scmp.ne.s32.totalorder %s263, %s277
      %p279 = scmp.eq.s32.totalorder %s33, 0
      %p280 = por %p278, %p279
      %s281 = ssub.s32 %s27, %s34
      %p282 = scmp.eq.s32.totalorder %s281, 0
      %s284 = sadd.s32 %s283, 1
      %s285 = scalar_select %p282, %s283, %s284
      %p288 = pneg %p282
      %p289 = scmp.eq.s32.totalorder %s27, 1
      %p290 = por %p288, %p289
      %p291 = scmp.ne.s32.totalorder %s283, %s286
      %p292 = scmp.eq.s32.totalorder %s27, 0
      %p293 = por %p291, %p292
      %p294 = scmp.ne.s32.totalorder %s283, %s286
      %p295 = scmp.eq.s32.totalorder %s32, 1
      %p296 = por %p294, %p295
      %p297 = scmp.ne.s32.totalorder %s286, %s287
      %p298 = scmp.eq.s32.totalorder %s32, 0
      %p299 = por %p297, %p298
      %p300 = scmp.ne.s32.totalorder %s286, %s287
      %p301 = scmp.eq.s32.totalorder %s33, 1
      %p302 = por %p300, %p301
      %p304 = scmp.ne.s32.totalorder %s287, %s303
      %p305 = scmp.eq.s32.totalorder %s33, 0
      %p306 = por %p304, %p305
      %p307 = scmp.le.s32.totalorder 1, %s27
      %p308 = scmp.lt.s32.totalorder %s27, 3
      %p309 = pnand %p307, %p308
      %p310 = pneg %p309
      // Predicated region
      $region9: #{tpu_custom_call.1} parent=5 // pred_check
        _
      $region10: #{tpu_custom_call.1} parent=5 // pred_check_branch
        %312 = sbr.rel (%p309) target = $region12
      $region11: #{tpu_custom_call.1} parent=5 // pred_region
        %s313 = ssub.s32 %s27, 1
        // Predicated region
        $region13: #{tpu_custom_call.1} parent=11 // pred_check
          %p314 = pneg %p126
        $region14: #{tpu_custom_call.1} parent=11 // pred_check_branch
          %316 = sbr.rel (%p314) target = $region16
        $region15: #{tpu_custom_call.1} parent=11 // pred_region
          %s318 = ssub.s32 512, 512
          %319 = vsyncadd [#allocation6], %s318
          %s320 = sshll.u32 [#allocation7], 4
          %s321 = int_to_ptr.vmem [resolvable:$true] %s320
          %326 = dma.hbm_to_vmem [thread:$0]  %s3, 512, %s321, [#allocation6], 128, 128, 8
        $region16: #{tpu_custom_call.1} parent=11 // pred_fallthru
          _
        // Predicated region
        $region17: #{tpu_custom_call.1} parent=11 // pred_check
          %p327 = pneg %p147
        $region18: #{tpu_custom_call.1} parent=11 // pred_check_branch
          %329 = sbr.rel (%p327) target = $region20
        $region19: #{tpu_custom_call.1} parent=11 // pred_region
          _
        $region20: #{tpu_custom_call.1} parent=11 // pred_fallthru
          _
        // Predicated region
        $region21: #{tpu_custom_call.1} parent=11 // pred_check
          %p330 = pneg %p168
        $region22: #{tpu_custom_call.1} parent=11 // pred_check_branch
          %332 = sbr.rel (%p330) target = $region24
        $region23: #{tpu_custom_call.1} parent=11 // pred_region
          %s334 = ssub.s32 512, 512
          %335 = vsyncadd [#allocation9], %s334
          %s336 = sshll.u32 [#allocation8], 4
          %s337 = int_to_ptr.vmem [resolvable:$true] %s336
          %342 = dma.hbm_to_vmem [thread:$0]  %s5, 512, %s337, [#allocation9], 128, 128, 8
        $region24: #{tpu_custom_call.1} parent=11 // pred_fallthru
          _
        // Predicated region
        $region25: #{tpu_custom_call.1} parent=11 // pred_check
          %p343 = pneg %p189
        $region26: #{tpu_custom_call.1} parent=11 // pred_check_branch
          %345 = sbr.rel (%p343) target = $region28
        $region27: #{tpu_custom_call.1} parent=11 // pred_region
          _
        $region28: #{tpu_custom_call.1} parent=11 // pred_fallthru
          _
        // Predicated region
        $region29: #{tpu_custom_call.1} parent=11 // pred_check
          %p346 = pneg %p210
        $region30: #{tpu_custom_call.1} parent=11 // pred_check_branch
          %348 = sbr.rel (%p346) target = $region32
        $region31: #{tpu_custom_call.1} parent=11 // pred_region
          %s350 = ssub.s32 512, 512
          %351 = vsyncadd [#allocation9], %s350
          %s352 = sshll.u32 [#allocation10], 4
          %s353 = int_to_ptr.vmem [resolvable:$true] %s352
          %358 = dma.hbm_to_vmem [thread:$0]  %s7, 512, %s353, [#allocation9], 128, 128, 8
        $region32: #{tpu_custom_call.1} parent=11 // pred_fallthru
          _
        // Predicated region
        $region33: #{tpu_custom_call.1} parent=11 // pred_check
          %p359 = pneg %p231
        $region34: #{tpu_custom_call.1} parent=11 // pred_check_branch
          %361 = sbr.rel (%p359) target = $region36
        $region35: #{tpu_custom_call.1} parent=11 // pred_region
          _
        $region36: #{tpu_custom_call.1} parent=11 // pred_fallthru
          _
        // Predicated region
        $region37: #{tpu_custom_call.1} parent=11 // pred_check
          %p362 = pneg %p252
        $region38: #{tpu_custom_call.1} parent=11 // pred_check_branch
          %364 = sbr.rel (%p362) target = $region40
        $region39: #{tpu_custom_call.1} parent=11 // pred_region
          _
        $region40: #{tpu_custom_call.1} parent=11 // pred_fallthru
          _
        // Predicated region
        $region41: #{tpu_custom_call.1} parent=11 // pred_check
          %p365 = pneg %p273
        $region42: #{tpu_custom_call.1} parent=11 // pred_check_branch
          %367 = sbr.rel (%p365) target = $region44
        $region43: #{tpu_custom_call.1} parent=11 // pred_region
          _
        $region44: #{tpu_custom_call.1} parent=11 // pred_fallthru
          _
      $region12: #{tpu_custom_call.1} parent=5 // pred_fallthru
        _
      %p368 = scmp.lt.s32.totalorder %s27, 2
      // Predicated region
      $region45: #{tpu_custom_call.1} parent=5 // pred_check
        %p369 = pneg %p368
      $region46: #{tpu_custom_call.1} parent=5 // pred_check_branch
        %371 = sbr.rel (%p369) target = $region48
      $region47: #{tpu_custom_call.1} parent=5 // pred_region
        // Predicated region
        $region49: #{tpu_custom_call.1} parent=47 // pred_check
          %p372 = pneg %p47
        $region50: #{tpu_custom_call.1} parent=47 // pred_check_branch
          %374 = sbr.rel (%p372) target = $region52
        $region51: #{tpu_custom_call.1} parent=47 // pred_region
          %s375 = sand.u32 %s37, 1
          %s376 = scalar_lea.sflag [#allocation3], %s375
          %s377 = sand.u32 %s37, 1
          %s378 = smul.addr %s377, 8
          %s379 = scalar_lea.vmem [#allocation2], %s378
          %s381 = ssub.s32 128, 128
          %382 = vsyncadd %s376, %s381
          %s383 = smul.addr %s27, 128
          %s384 = scalar_lea.hbm %s0, %s383
          %s386 = sshll.u32 %s379, 4
          %s387 = int_to_ptr.vmem [resolvable:$true] %s386
          %389 = dma.hbm_to_vmem [thread:$0]  %s384, 128, %s387, %s376
        $region52: #{tpu_custom_call.1} parent=47 // pred_fallthru
          _
        // Predicated region
        $region53: #{tpu_custom_call.1} parent=47 // pred_check
          %p390 = pneg %p73
        $region54: #{tpu_custom_call.1} parent=47 // pred_check_branch
          %392 = sbr.rel (%p390) target = $region56
        $region55: #{tpu_custom_call.1} parent=47 // pred_region
          %s393 = sand.u32 %s27, 1
          %s394 = scalar_lea.sflag [#allocation6], %s393
          %s395 = sand.u32 %s63, 1
          %s396 = smul.addr %s395, 8
          %s397 = scalar_lea.vmem [#allocation5], %s396
          %s399 = ssub.s32 128, 128
          %400 = vsyncadd %s394, %s399
          %s401 = smul.addr %s27, 128
          %s402 = scalar_lea.hbm %s1, %s401
          %s404 = sshll.u32 %s397, 4
          %s405 = int_to_ptr.vmem [resolvable:$true] %s404
          %407 = dma.hbm_to_vmem [thread:$0]  %s402, 128, %s405, %s394
        $region56: #{tpu_custom_call.1} parent=47 // pred_fallthru
          _
        // Predicated region
        $region57: #{tpu_custom_call.1} parent=47 // pred_check
          %p408 = pneg %p99
        $region58: #{tpu_custom_call.1} parent=47 // pred_check_branch
          %410 = sbr.rel (%p408) target = $region60
        $region59: #{tpu_custom_call.1} parent=47 // pred_region
          %p411 = scmp.lt.s32.totalorder %s27, 1
          %s412 = scalar_select %p411, %s27, 1
          %s413 = scalar_lea.vmem %s2, %s412
        $region60: #{tpu_custom_call.1} parent=47 // pred_fallthru
          _
      $region48: #{tpu_custom_call.1} parent=5 // pred_fallthru
        _
      %p414 = scmp.le.s32.totalorder 1, %s27
      %p415 = scmp.lt.s32.totalorder %s27, 3
      %p416 = pnand %p414, %p415
      %p417 = pneg %p416
      // Predicated region
      $region61: #{tpu_custom_call.1} parent=5 // pred_check
        _
      $region62: #{tpu_custom_call.1} parent=5 // pred_check_branch
        %419 = sbr.rel (%p416) target = $region64
      $region63: #{tpu_custom_call.1} parent=5 // pred_region
        %s420 = ssub.s32 %s27, 1
        %s421 = sand.u32 %s40, 1
        %s422 = scalar_lea.sflag [#allocation3], %s421
        %s423 = sand.u32 %s40, 1
        %s424 = smul.addr %s423, 8
        %s425 = scalar_lea.vmem [#allocation2], %s424
        // Predicated region
        $region65: #{tpu_custom_call.1} parent=63 // pred_check
          %p426 = pneg %p53
        $region66: #{tpu_custom_call.1} parent=63 // pred_check_branch
          %428 = sbr.rel (%p426) target = $region68
        $region67: #{tpu_custom_call.1} parent=63 // pred_region
          %429 = dma.done %s422, 128
        $region68: #{tpu_custom_call.1} parent=63 // pred_fallthru
          _
        %s430 = sand.u32 %s32, 1
        %s431 = scalar_lea.sflag [#allocation6], %s430
        %s432 = sand.u32 %s66, 1
        %s433 = smul.addr %s432, 8
        %s434 = scalar_lea.vmem [#allocation5], %s433
        // Predicated region
        $region69: #{tpu_custom_call.1} parent=63 // pred_check
          %p435 = pneg %p79
        $region70: #{tpu_custom_call.1} parent=63 // pred_check_branch
          %437 = sbr.rel (%p435) target = $region72
        $region71: #{tpu_custom_call.1} parent=63 // pred_region
          %438 = dma.done %s431, 128
        $region72: #{tpu_custom_call.1} parent=63 // pred_fallthru
          _
        // Predicated region
        $region73: #{tpu_custom_call.1} parent=63 // pred_check
          %p439 = pneg %p126
        $region74: #{tpu_custom_call.1} parent=63 // pred_check_branch
          %441 = sbr.rel (%p439) target = $region76
        $region75: #{tpu_custom_call.1} parent=63 // pred_region
          %442 = dma.done [#allocation6], 512
        $region76: #{tpu_custom_call.1} parent=63 // pred_fallthru
          _
        // Predicated region
        $region77: #{tpu_custom_call.1} parent=63 // pred_check
          %p443 = pneg %p168
        $region78: #{tpu_custom_call.1} parent=63 // pred_check_branch
          %445 = sbr.rel (%p443) target = $region80
        $region79: #{tpu_custom_call.1} parent=63 // pred_region
          %446 = dma.done [#allocation9], 512
        $region80: #{tpu_custom_call.1} parent=63 // pred_fallthru
          _
        // Predicated region
        $region81: #{tpu_custom_call.1} parent=63 // pred_check
          %p447 = pneg %p210
        $region82: #{tpu_custom_call.1} parent=63 // pred_check_branch
          %449 = sbr.rel (%p447) target = $region84
        $region83: #{tpu_custom_call.1} parent=63 // pred_region
          %450 = dma.done [#allocation9], 512
        $region84: #{tpu_custom_call.1} parent=63 // pred_fallthru
          _
        %s451 = sand.u32 %s40, 1
        %s452 = scalar_lea.sflag [#allocation3], %s451
        %s453 = sand.u32 %s40, 1
        %s454 = smul.addr %s453, 8
        %s455 = scalar_lea.vmem [#allocation2], %s454
        %p456 = pneg %p53
        %p457 = pneg %p50
        %s458 = sand.u32 %s32, 1
        %s459 = scalar_lea.sflag [#allocation6], %s458
        %s460 = sand.u32 %s66, 1
        %s461 = smul.addr %s460, 8
        %s462 = scalar_lea.vmem [#allocation5], %s461
        %p463 = pneg %p79
        %p464 = pneg %p76
        %p465 = scmp.lt.s32.totalorder %s32, 1
        %s466 = scalar_select %p465, %s32, 1
        %s467 = scalar_lea.vmem %s2, %s466
        %p468 = pneg %p105
        %p469 = pneg %p102
        %p470 = pneg %p126
        %p471 = pneg %p123
        %p472 = pneg %p147
        %p473 = pneg %p144
        %p474 = pneg %p168
        %p475 = pneg %p165
        %p476 = pneg %p189
        %p477 = pneg %p186
        %p478 = pneg %p210
        %p479 = pneg %p207
        %p480 = pneg %p231
        %p481 = pneg %p228
        %p482 = pneg %p252
        %p483 = pneg %p249
        %p484 = pneg %p273
        %p485 = pneg %p270
        %p486 = pneg %p299
        %p487 = pneg %p296
        %s488 = sand.u32 %s286, 1
        %s489 = scalar_lea.sflag [#allocation4], %s488
        %s490 = sand.u32 %s286, 1
        %s491 = smul.addr %s490, 8
        %s492 = scalar_lea.vmem [#allocation11], %s491
        %p493 = scmp.lt.s32.totalorder %s32, 1
        %s494 = scalar_select %p493, %s32, 1
        %s495 = scalar_lea.vmem %s2, %s494
        %v496 = vld [vmem:[%s425] sm:$0xff]
        %v497 = vld [vmem:[%s434] sm:$0xff]
        %v498 = vld [vmem:[#allocation7] sm:$0xff]
        %v499 = vld [vmem:[#allocation7 + $0x8] sm:$0xff]
        %v500 = vld [vmem:[#allocation7 + $0x10] sm:$0xff]
        %v501 = vld [vmem:[#allocation7 + $0x18] sm:$0xff]
        %v502 = vld [vmem:[%s4] sm:$0x1]
        %v504 = vlaneseq
        %v505 = vshrl.u32 %v504, 7
        %v506 = vsub.s32 0, %v505
        %v507 = vrot.slane %v502, %v506
        %vm509 = vcmask 261120
        %v511 = vsel %vm509, %v496, 0
        %513 = vmatprep.subr.mxu0 0.0
        %514 = vmatpush1.msra.mxu0 %v498
        %515 = vmatprep.subr.mxu0 0.0
        %516 = vmatpush1.msra.mxu0 %v499
        %517 = vmatprep.subr.mxu0 0.0
        %518 = vmatpush1.msra.mxu0 %v500
        %519 = vmatprep.subr.mxu0 0.0
        %520 = vmatpush1.msra.mxu0 %v501
        %521 = vmatprep.subr.mxu0 0.0
        %522 = vmatpush1.msra.mxu0 0.0
        %523 = vmatprep.subr.mxu0 0.0
        %524 = vmatpush1.msra.mxu0 0.0
        %525 = vmatprep.subr.mxu0 0.0
        %526 = vmatpush1.msra.mxu0 0.0
        %527 = vmatprep.subr.mxu0 0.0
        %528 = vmatpush1.msra.mxu0 0.0
        %529 = vmatprep.subr.mxu0 0.0
        %530 = vmatpush1.msra.mxu0 0.0
        %531 = vmatprep.subr.mxu0 0.0
        %532 = vmatpush1.msra.mxu0 0.0
        %533 = vmatprep.subr.mxu0 0.0
        %534 = vmatpush1.msra.mxu0 0.0
        %535 = vmatprep.subr.mxu0 0.0
        %536 = vmatpush1.msra.mxu0 0.0
        %537 = vmatprep.subr.mxu0 0.0
        %538 = vmatpush1.msra.mxu0 0.0
        %539 = vmatprep.subr.mxu0 0.0
        %540 = vmatpush1.msra.mxu0 0.0
        %541 = vmatprep.subr.mxu0 0.0
        %542 = vmatpush1.msra.mxu0 0.0
        %543 = vmatprep.subr.mxu0 0.0
        %544 = vmatpush1.msra.mxu0 0.0
        %545 = vmatprep.subr.mxu0 0.0
        %546 = vmatpush1.msra.mxu0 0.0
        %547 = vmatprep.subr.mxu0 0.0
        %548 = vmatpush1.msra.mxu0 0.0
        %549 = vmatprep.subr.mxu0 0.0
        %550 = vmatpush1.msra.mxu0 0.0
        %551 = vmatprep.subr.mxu0 0.0
        %552 = vmatpush1.msra.mxu0 0.0
        %553 = vmatprep.subr.mxu0 0.0
        %554 = vmatpush1.msra.mxu0 0.0
        %555 = vmatprep.subr.mxu0 0.0
        %556 = vmatpush1.msra.mxu0 0.0
        %557 = vmatprep.subr.mxu0 0.0
        %558 = vmatpush1.msra.mxu0 0.0
        %559 = vmatprep.subr.mxu0 0.0
        %560 = vmatpush1.msra.mxu0 0.0
        %561 = vmatprep.subr.mxu0 0.0
        %562 = vmatpush1.msra.mxu0 0.0
        %563 = vmatprep.subr.mxu0 0.0
        %564 = vmatpush1.msra.mxu0 0.0
        %565 = vmatprep.subr.mxu0 0.0
        %566 = vmatpush1.msra.mxu0 0.0
        %567 = vmatprep.subr.mxu0 0.0
        %568 = vmatpush1.msra.mxu0 0.0
        %569 = vmatprep.subr.mxu0 0.0
        %570 = vmatpush1.msra.mxu0 0.0
        %571 = vmatprep.subr.mxu0 0.0
        %572 = vmatpush1.msra.mxu0 0.0
        %573 = vmatprep.subr.mxu0 0.0
        %574 = vmatpush1.msra.mxu0 0.0
        %575 = vmatprep.subr.mxu0 0.0
        %576 = vmatpush1.msra.mxu0 0.0
        %577 = vmatprep.mubr.f32.mxu0 0.0
        %578 = vmatmul.mubr.f32.gmra.mrb[0].mxu0 %v511
        %v579 = vpop.f32.mrb[0].mxu0
        %v580 = vadd.f32 %v507, %v579
        %v581 = vpop.f32.mrb[0].mxu0
        %582 = vdwg.mxu0
        %v583 = vld [vmem:[#allocation8] sm:$0xff]
        %v584 = vld [vmem:[#allocation8 + $0x8] sm:$0xff]
        %v585 = vld [vmem:[#allocation8 + $0x10] sm:$0xff]
        %v586 = vld [vmem:[#allocation8 + $0x18] sm:$0xff]
        %v587 = vld [vmem:[%s6] sm:$0x1]
        %v589 = vlaneseq
        %v590 = vshrl.u32 %v589, 7
        %v591 = vsub.s32 0, %v590
        %v592 = vrot.slane %v587, %v591
        %v595 = vsel %vm509, %v497, 0
        %597 = vmatprep.subr.mxu0 0.0
        %598 = vmatpush1.msra.mxu0 %v583
        %599 = vmatprep.subr.mxu0 0.0
        %600 = vmatpush1.msra.mxu0 %v584
        %601 = vmatprep.subr.mxu0 0.0
        %602 = vmatpush1.msra.mxu0 %v585
        %603 = vmatprep.subr.mxu0 0.0
        %604 = vmatpush1.msra.mxu0 %v586
        %605 = vmatprep.subr.mxu0 0.0
        %606 = vmatpush1.msra.mxu0 0.0
        %607 = vmatprep.subr.mxu0 0.0
        %608 = vmatpush1.msra.mxu0 0.0
        %609 = vmatprep.subr.mxu0 0.0
        %610 = vmatpush1.msra.mxu0 0.0
        %611 = vmatprep.subr.mxu0 0.0
        %612 = vmatpush1.msra.mxu0 0.0
        %613 = vmatprep.subr.mxu0 0.0
        %614 = vmatpush1.msra.mxu0 0.0
        %615 = vmatprep.subr.mxu0 0.0
        %616 = vmatpush1.msra.mxu0 0.0
        %617 = vmatprep.subr.mxu0 0.0
        %618 = vmatpush1.msra.mxu0 0.0
        %619 = vmatprep.subr.mxu0 0.0
        %620 = vmatpush1.msra.mxu0 0.0
        %621 = vmatprep.subr.mxu0 0.0
        %622 = vmatpush1.msra.mxu0 0.0
        %623 = vmatprep.subr.mxu0 0.0
        %624 = vmatpush1.msra.mxu0 0.0
        %625 = vmatprep.subr.mxu0 0.0
        %626 = vmatpush1.msra.mxu0 0.0
        %627 = vmatprep.subr.mxu0 0.0
        %628 = vmatpush1.msra.mxu0 0.0
        %629 = vmatprep.subr.mxu0 0.0
        %630 = vmatpush1.msra.mxu0 0.0
        %631 = vmatprep.subr.mxu0 0.0
        %632 = vmatpush1.msra.mxu0 0.0
        %633 = vmatprep.subr.mxu0 0.0
        %634 = vmatpush1.msra.mxu0 0.0
        %635 = vmatprep.subr.mxu0 0.0
        %636 = vmatpush1.msra.mxu0 0.0
        %637 = vmatprep.subr.mxu0 0.0
        %638 = vmatpush1.msra.mxu0 0.0
        %639 = vmatprep.subr.mxu0 0.0
        %640 = vmatpush1.msra.mxu0 0.0
        %641 = vmatprep.subr.mxu0 0.0
        %642 = vmatpush1.msra.mxu0 0.0
        %643 = vmatprep.subr.mxu0 0.0
        %644 = vmatpush1.msra.mxu0 0.0
        %645 = vmatprep.subr.mxu0 0.0
        %646 = vmatpush1.msra.mxu0 0.0
        %647 = vmatprep.subr.mxu0 0.0
        %648 = vmatpush1.msra.mxu0 0.0
        %649 = vmatprep.subr.mxu0 0.0
        %650 = vmatpush1.msra.mxu0 0.0
        %651 = vmatprep.subr.mxu0 0.0
        %652 = vmatpush1.msra.mxu0 0.0
        %653 = vmatprep.subr.mxu0 0.0
        %654 = vmatpush1.msra.mxu0 0.0
        %655 = vmatprep.subr.mxu0 0.0
        %656 = vmatpush1.msra.mxu0 0.0
        %657 = vmatprep.subr.mxu0 0.0
        %658 = vmatpush1.msra.mxu0 0.0
        %659 = vmatprep.subr.mxu0 0.0
        %660 = vmatpush1.msra.mxu0 0.0
        %661 = vmatprep.mubr.f32.mxu0 0.0
        %662 = vmatmul.mubr.f32.gmra.mrb[0].mxu0 %v595
        %v663 = vpop.f32.mrb[0].mxu0
        %v664 = vadd.f32 %v592, %v663
        %v665 = vpop.f32.mrb[0].mxu0
        %666 = vdwg.mxu0
        %668 = vrot.lane.b32.xlu0 %v664, 32
        %v669 = vpop.permute.xlu0 %668
        %v671 = vadd.f32 %v580, %v669
        %v672 = vld [vmem:[%s495] sm:$0x1]
        %674 = vrot.lane.b32.xlu0 %v671, 96
        %v675 = vpop.permute.xlu0 %674
        %vm676 = vcmask 64512
        %v678 = vsel %vm676, %v580, 0
        %v680 = vsel %vm676, %v675, 0
        %682 = vmatprep.subr.mxu0 0.0
        %683 = vmatpush1.xpose.msra.mxu0 %v680
        %684 = vmatprep.subr.mxu0 0.0
        %685 = vmatpush1.xpose.msra.mxu0 0.0
        %686 = vmatprep.subr.mxu0 0.0
        %687 = vmatpush1.xpose.msra.mxu0 0.0
        %688 = vmatprep.subr.mxu0 0.0
        %689 = vmatpush1.xpose.msra.mxu0 0.0
        %690 = vmatprep.subr.mxu0 0.0
        %691 = vmatpush1.xpose.msra.mxu0 0.0
        %692 = vmatprep.subr.mxu0 0.0
        %693 = vmatpush1.xpose.msra.mxu0 0.0
        %694 = vmatprep.subr.mxu0 0.0
        %695 = vmatpush1.xpose.msra.mxu0 0.0
        %696 = vmatprep.subr.mxu0 0.0
        %697 = vmatpush1.xpose.msra.mxu0 0.0
        %698 = vmatprep.subr.mxu0 0.0
        %699 = vmatpush1.xpose.msra.mxu0 0.0
        %700 = vmatprep.subr.mxu0 0.0
        %701 = vmatpush1.xpose.msra.mxu0 0.0
        %702 = vmatprep.subr.mxu0 0.0
        %703 = vmatpush1.xpose.msra.mxu0 0.0
        %704 = vmatprep.subr.mxu0 0.0
        %705 = vmatpush1.xpose.msra.mxu0 0.0
        %706 = vmatprep.subr.mxu0 0.0
        %707 = vmatpush1.xpose.msra.mxu0 0.0
        %708 = vmatprep.subr.mxu0 0.0
        %709 = vmatpush1.xpose.msra.mxu0 0.0
        %710 = vmatprep.subr.mxu0 0.0
        %711 = vmatpush1.xpose.msra.mxu0 0.0
        %712 = vmatprep.subr.mxu0 0.0
        %713 = vmatpush1.xpose.msra.mxu0 0.0
        %714 = vmatprep.subr.mxu0 0.0
        %715 = vmatpush1.xpose.msra.mxu0 0.0
        %716 = vmatprep.subr.mxu0 0.0
        %717 = vmatpush1.xpose.msra.mxu0 0.0
        %718 = vmatprep.subr.mxu0 0.0
        %719 = vmatpush1.xpose.msra.mxu0 0.0
        %720 = vmatprep.subr.mxu0 0.0
        %721 = vmatpush1.xpose.msra.mxu0 0.0
        %722 = vmatprep.subr.mxu0 0.0
        %723 = vmatpush1.xpose.msra.mxu0 0.0
        %724 = vmatprep.subr.mxu0 0.0
        %725 = vmatpush1.xpose.msra.mxu0 0.0
        %726 = vmatprep.subr.mxu0 0.0
        %727 = vmatpush1.xpose.msra.mxu0 0.0
        %728 = vmatprep.subr.mxu0 0.0
        %729 = vmatpush1.xpose.msra.mxu0 0.0
        %730 = vmatprep.subr.mxu0 0.0
        %731 = vmatpush1.xpose.msra.mxu0 0.0
        %732 = vmatprep.subr.mxu0 0.0
        %733 = vmatpush1.xpose.msra.mxu0 0.0
        %734 = vmatprep.subr.mxu0 0.0
        %735 = vmatpush1.xpose.msra.mxu0 0.0
        %736 = vmatprep.subr.mxu0 0.0
        %737 = vmatpush1.xpose.msra.mxu0 0.0
        %738 = vmatprep.subr.mxu0 0.0
        %739 = vmatpush1.xpose.msra.mxu0 0.0
        %740 = vmatprep.subr.mxu0 0.0
        %741 = vmatpush1.xpose.msra.mxu0 0.0
        %742 = vmatprep.subr.mxu0 0.0
        %743 = vmatpush1.xpose.msra.mxu0 0.0
        %744 = vmatprep.subr.mxu0 0.0
        %745 = vmatpush1.xpose.msra.mxu0 0.0
        %746 = vmatprep.mubr.f32.mxu0 0.0
        %747 = vmatmul.mubr.f32.gmra.mrb[0].mxu0 %v678
        %v748 = vpop.f32.mrb[0].mxu0
        %v749 = vadd.f32 0.0, %v748
        %v750 = vpop.f32.mrb[0].mxu0
        %751 = vdwg.mxu0
        %v752 = vmul.f32 %v749, 0.35355338
        %v754 = vlaneseq
        %v755 = vshrl.u32 %v754, 7
        %v756 = vsub.s32 0, %v755
        %v757 = vrot.slane %v672, %v756
        %v759 = vadd.f32 %v752, %v757
        %v760 = vsel %vm676, %v759, -inf
        %761 = vmax.xlane.f32.xlu0 %v760
        %v762 = vpop.xlane.xlu0 %761
        %v763 = vsub.f32 %v759, %v762
        %v764 = vmul.f32 %v763, 1.442695
        %v765 = vpow.pop %v764
        %v766 = vsel %vm676, %v765, 0.0
        %767 = vadd.xlane.f32.xlu0 %v766
        %v768 = vpop.xlane.xlu0 %767
        %v769 = vrcp.pop %v768
        %v770 = vmul.f32 %v765, %v769
        %771 = vrot.lane.b32.xlu0 %v671, 64
        %v772 = vpop.permute.xlu0 %771
        %v775 = vsel %vm676, %v770, 0
        %777 = vmatprep.subr.mxu0 0.0
        %778 = vmatpush1.msra.mxu0 %v772
        %779 = vmatprep.subr.mxu0 0.0
        %780 = vmatpush1.msra.mxu0 0.0
        %781 = vmatprep.subr.mxu0 0.0
        %782 = vmatpush1.msra.mxu0 0.0
        %783 = vmatprep.subr.mxu0 0.0
        %784 = vmatpush1.msra.mxu0 0.0
        %785 = vmatprep.subr.mxu0 0.0
        %786 = vmatpush1.msra.mxu0 0.0
        %787 = vmatprep.subr.mxu0 0.0
        %788 = vmatpush1.msra.mxu0 0.0
        %789 = vmatprep.subr.mxu0 0.0
        %790 = vmatpush1.msra.mxu0 0.0
        %791 = vmatprep.subr.mxu0 0.0
        %792 = vmatpush1.msra.mxu0 0.0
        %793 = vmatprep.subr.mxu0 0.0
        %794 = vmatpush1.msra.mxu0 0.0
        %795 = vmatprep.subr.mxu0 0.0
        %796 = vmatpush1.msra.mxu0 0.0
        %797 = vmatprep.subr.mxu0 0.0
        %798 = vmatpush1.msra.mxu0 0.0
        %799 = vmatprep.subr.mxu0 0.0
        %800 = vmatpush1.msra.mxu0 0.0
        %801 = vmatprep.subr.mxu0 0.0
        %802 = vmatpush1.msra.mxu0 0.0
        %803 = vmatprep.subr.mxu0 0.0
        %804 = vmatpush1.msra.mxu0 0.0
        %805 = vmatprep.subr.mxu0 0.0
        %806 = vmatpush1.msra.mxu0 0.0
        %807 = vmatprep.subr.mxu0 0.0
        %808 = vmatpush1.msra.mxu0 0.0
        %809 = vmatprep.subr.mxu0 0.0
        %810 = vmatpush1.msra.mxu0 0.0
        %811 = vmatprep.subr.mxu0 0.0
        %812 = vmatpush1.msra.mxu0 0.0
        %813 = vmatprep.subr.mxu0 0.0
        %814 = vmatpush1.msra.mxu0 0.0
        %815 = vmatprep.subr.mxu0 0.0
        %816 = vmatpush1.msra.mxu0 0.0
        %817 = vmatprep.subr.mxu0 0.0
        %818 = vmatpush1.msra.mxu0 0.0
        %819 = vmatprep.subr.mxu0 0.0
        %820 = vmatpush1.msra.mxu0 0.0
        %821 = vmatprep.subr.mxu0 0.0
        %822 = vmatpush1.msra.mxu0 0.0
        %823 = vmatprep.subr.mxu0 0.0
        %824 = vmatpush1.msra.mxu0 0.0
        %825 = vmatprep.subr.mxu0 0.0
        %826 = vmatpush1.msra.mxu0 0.0
        %827 = vmatprep.subr.mxu0 0.0
        %828 = vmatpush1.msra.mxu0 0.0
        %829 = vmatprep.subr.mxu0 0.0
        %830 = vmatpush1.msra.mxu0 0.0
        %831 = vmatprep.subr.mxu0 0.0
        %832 = vmatpush1.msra.mxu0 0.0
        %833 = vmatprep.subr.mxu0 0.0
        %834 = vmatpush1.msra.mxu0 0.0
        %835 = vmatprep.subr.mxu0 0.0
        %836 = vmatpush1.msra.mxu0 0.0
        %837 = vmatprep.subr.mxu0 0.0
        %838 = vmatpush1.msra.mxu0 0.0
        %839 = vmatprep.subr.mxu0 0.0
        %840 = vmatpush1.msra.mxu0 0.0
        %841 = vmatprep.mubr.f32.mxu0 0.0
        %842 = vmatmul.mubr.f32.gmra.mrb[0].mxu0 %v775
        %v843 = vpop.f32.mrb[0].mxu0
        %v844 = vadd.f32 0.0, %v843
        %v845 = vpop.f32.mrb[0].mxu0
        %846 = vdwg.mxu0
        %847 = vrot.lane.b32.xlu0 %v580, 120
        %v848 = vpop.permute.xlu0 %847
        %849 = vrot.lane.b32.xlu0 %v671, 88
        %v850 = vpop.permute.xlu0 %849
        %v851 = vsel %vm676, %v848, 0
        %v853 = vsel %vm676, %v850, 0
        %855 = vmatprep.subr.mxu0 0.0
        %856 = vmatpush1.xpose.msra.mxu0 %v853
        %857 = vmatprep.subr.mxu0 0.0
        %858 = vmatpush1.xpose.msra.mxu0 0.0
        %859 = vmatprep.subr.mxu0 0.0
        %860 = vmatpush1.xpose.msra.mxu0 0.0
        %861 = vmatprep.subr.mxu0 0.0
        %862 = vmatpush1.xpose.msra.mxu0 0.0
        %863 = vmatprep.subr.mxu0 0.0
        %864 = vmatpush1.xpose.msra.mxu0 0.0
        %865 = vmatprep.subr.mxu0 0.0
        %866 = vmatpush1.xpose.msra.mxu0 0.0
        %867 = vmatprep.subr.mxu0 0.0
        %868 = vmatpush1.xpose.msra.mxu0 0.0
        %869 = vmatprep.subr.mxu0 0.0
        %870 = vmatpush1.xpose.msra.mxu0 0.0
        %871 = vmatprep.subr.mxu0 0.0
        %872 = vmatpush1.xpose.msra.mxu0 0.0
        %873 = vmatprep.subr.mxu0 0.0
        %874 = vmatpush1.xpose.msra.mxu0 0.0
        %875 = vmatprep.subr.mxu0 0.0
        %876 = vmatpush1.xpose.msra.mxu0 0.0
        %877 = vmatprep.subr.mxu0 0.0
        %878 = vmatpush1.xpose.msra.mxu0 0.0
        %879 = vmatprep.subr.mxu0 0.0
        %880 = vmatpush1.xpose.msra.mxu0 0.0
        %881 = vmatprep.subr.mxu0 0.0
        %882 = vmatpush1.xpose.msra.mxu0 0.0
        %883 = vmatprep.subr.mxu0 0.0
        %884 = vmatpush1.xpose.msra.mxu0 0.0
        %885 = vmatprep.subr.mxu0 0.0
        %886 = vmatpush1.xpose.msra.mxu0 0.0
        %887 = vmatprep.subr.mxu0 0.0
        %888 = vmatpush1.xpose.msra.mxu0 0.0
        %889 = vmatprep.subr.mxu0 0.0
        %890 = vmatpush1.xpose.msra.mxu0 0.0
        %891 = vmatprep.subr.mxu0 0.0
        %892 = vmatpush1.xpose.msra.mxu0 0.0
        %893 = vmatprep.subr.mxu0 0.0
        %894 = vmatpush1.xpose.msra.mxu0 0.0
        %895 = vmatprep.subr.mxu0 0.0
        %896 = vmatpush1.xpose.msra.mxu0 0.0
        %897 = vmatprep.subr.mxu0 0.0
        %898 = vmatpush1.xpose.msra.mxu0 0.0
        %899 = vmatprep.subr.mxu0 0.0
        %900 = vmatpush1.xpose.msra.mxu0 0.0
        %901 = vmatprep.subr.mxu0 0.0
        %902 = vmatpush1.xpose.msra.mxu0 0.0
        %903 = vmatprep.subr.mxu0 0.0
        %904 = vmatpush1.xpose.msra.mxu0 0.0
        %905 = vmatprep.subr.mxu0 0.0
        %906 = vmatpush1.xpose.msra.mxu0 0.0
        %907 = vmatprep.subr.mxu0 0.0
        %908 = vmatpush1.xpose.msra.mxu0 0.0
        %909 = vmatprep.subr.mxu0 0.0
        %910 = vmatpush1.xpose.msra.mxu0 0.0
        %911 = vmatprep.subr.mxu0 0.0
        %912 = vmatpush1.xpose.msra.mxu0 0.0
        %913 = vmatprep.subr.mxu0 0.0
        %914 = vmatpush1.xpose.msra.mxu0 0.0
        %915 = vmatprep.subr.mxu0 0.0
        %916 = vmatpush1.xpose.msra.mxu0 0.0
        %917 = vmatprep.subr.mxu0 0.0
        %918 = vmatpush1.xpose.msra.mxu0 0.0
        %919 = vmatprep.mubr.f32.mxu0 0.0
        %920 = vmatmul.mubr.f32.gmra.mrb[0].mxu0 %v851
        %v921 = vpop.f32.mrb[0].mxu0
        %v922 = vadd.f32 0.0, %v921
        %v923 = vpop.f32.mrb[0].mxu0
        %924 = vdwg.mxu0
        %v925 = vmul.f32 %v922, 0.35355338
        %v926 = vadd.f32 %v925, %v757
        %v927 = vsel %vm676, %v926, -inf
        %928 = vmax.xlane.f32.xlu0 %v927
        %v929 = vpop.xlane.xlu0 %928
        %v930 = vsub.f32 %v926, %v929
        %v931 = vmul.f32 %v930, 1.442695
        %v932 = vpow.pop %v931
        %v933 = vsel %vm676, %v932, 0.0
        %934 = vadd.xlane.f32.xlu0 %v933
        %v935 = vpop.xlane.xlu0 %934
        %v936 = vrcp.pop %v935
        %v937 = vmul.f32 %v932, %v936
        %938 = vrot.lane.b32.xlu0 %v671, 56
        %v939 = vpop.permute.xlu0 %938
        %v942 = vsel %vm676, %v937, 0
        %944 = vmatprep.subr.mxu0 0.0
        %945 = vmatpush1.msra.mxu0 %v939
        %946 = vmatprep.subr.mxu0 0.0
        %947 = vmatpush1.msra.mxu0 0.0
        %948 = vmatprep.subr.mxu0 0.0
        %949 = vmatpush1.msra.mxu0 0.0
        %950 = vmatprep.subr.mxu0 0.0
        %951 = vmatpush1.msra.mxu0 0.0
        %952 = vmatprep.subr.mxu0 0.0
        %953 = vmatpush1.msra.mxu0 0.0
        %954 = vmatprep.subr.mxu0 0.0
        %955 = vmatpush1.msra.mxu0 0.0
        %956 = vmatprep.subr.mxu0 0.0
        %957 = vmatpush1.msra.mxu0 0.0
        %958 = vmatprep.subr.mxu0 0.0
        %959 = vmatpush1.msra.mxu0 0.0
        %960 = vmatprep.subr.mxu0 0.0
        %961 = vmatpush1.msra.mxu0 0.0
        %962 = vmatprep.subr.mxu0 0.0
        %963 = vmatpush1.msra.mxu0 0.0
        %964 = vmatprep.subr.mxu0 0.0
        %965 = vmatpush1.msra.mxu0 0.0
        %966 = vmatprep.subr.mxu0 0.0
        %967 = vmatpush1.msra.mxu0 0.0
        %968 = vmatprep.subr.mxu0 0.0
        %969 = vmatpush1.msra.mxu0 0.0
        %970 = vmatprep.subr.mxu0 0.0
        %971 = vmatpush1.msra.mxu0 0.0
        %972 = vmatprep.subr.mxu0 0.0
        %973 = vmatpush1.msra.mxu0 0.0
        %974 = vmatprep.subr.mxu0 0.0
        %975 = vmatpush1.msra.mxu0 0.0
        %976 = vmatprep.subr.mxu0 0.0
        %977 = vmatpush1.msra.mxu0 0.0
        %978 = vmatprep.subr.mxu0 0.0
        %979 = vmatpush1.msra.mxu0 0.0
        %980 = vmatprep.subr.mxu0 0.0
        %981 = vmatpush1.msra.mxu0 0.0
        %982 = vmatprep.subr.mxu0 0.0
        %983 = vmatpush1.msra.mxu0 0.0
        %984 = vmatprep.subr.mxu0 0.0
        %985 = vmatpush1.msra.mxu0 0.0
        %986 = vmatprep.subr.mxu0 0.0
        %987 = vmatpush1.msra.mxu0 0.0
        %988 = vmatprep.subr.mxu0 0.0
        %989 = vmatpush1.msra.mxu0 0.0
        %990 = vmatprep.subr.mxu0 0.0
        %991 = vmatpush1.msra.mxu0 0.0
        %992 = vmatprep.subr.mxu0 0.0
        %993 = vmatpush1.msra.mxu0 0.0
        %994 = vmatprep.subr.mxu0 0.0
        %995 = vmatpush1.msra.mxu0 0.0
        %996 = vmatprep.subr.mxu0 0.0
        %997 = vmatpush1.msra.mxu0 0.0
        %998 = vmatprep.subr.mxu0 0.0
        %999 = vmatpush1.msra.mxu0 0.0
        %1000 = vmatprep.subr.mxu0 0.0
        %1001 = vmatpush1.msra.mxu0 0.0
        %1002 = vmatprep.subr.mxu0 0.0
        %1003 = vmatpush1.msra.mxu0 0.0
        %1004 = vmatprep.subr.mxu0 0.0
        %1005 = vmatpush1.msra.mxu0 0.0
        %1006 = vmatprep.subr.mxu0 0.0
        %1007 = vmatpush1.msra.mxu0 0.0
        %1008 = vmatprep.mubr.f32.mxu0 0.0
        %1009 = vmatmul.mubr.f32.gmra.mrb[0].mxu0 %v942
        %v1010 = vpop.f32.mrb[0].mxu0
        %v1011 = vadd.f32 0.0, %v1010
        %v1012 = vpop.f32.mrb[0].mxu0
        %1013 = vdwg.mxu0
        %1014 = vrot.lane.b32.xlu0 %v580, 112
        %v1015 = vpop.permute.xlu0 %1014
        %1016 = vrot.lane.b32.xlu0 %v671, 80
        %v1017 = vpop.permute.xlu0 %1016
        %v1018 = vsel %vm676, %v1015, 0
        %v1020 = vsel %vm676, %v1017, 0
        %1022 = vmatprep.subr.mxu0 0.0
        %1023 = vmatpush1.xpose.msra.mxu0 %v1020
        %1024 = vmatprep.subr.mxu0 0.0
        %1025 = vmatpush1.xpose.msra.mxu0 0.0
        %1026 = vmatprep.subr.mxu0 0.0
        %1027 = vmatpush1.xpose.msra.mxu0 0.0
        %1028 = vmatprep.subr.mxu0 0.0
        %1029 = vmatpush1.xpose.msra.mxu0 0.0
        %1030 = vmatprep.subr.mxu0 0.0
        %1031 = vmatpush1.xpose.msra.mxu0 0.0
        %1032 = vmatprep.subr.mxu0 0.0
        %1033 = vmatpush1.xpose.msra.mxu0 0.0
        %1034 = vmatprep.subr.mxu0 0.0
        %1035 = vmatpush1.xpose.msra.mxu0 0.0
        %1036 = vmatprep.subr.mxu0 0.0
        %1037 = vmatpush1.xpose.msra.mxu0 0.0
        %1038 = vmatprep.subr.mxu0 0.0
        %1039 = vmatpush1.xpose.msra.mxu0 0.0
        %1040 = vmatprep.subr.mxu0 0.0
        %1041 = vmatpush1.xpose.msra.mxu0 0.0
        %1042 = vmatprep.subr.mxu0 0.0
        %1043 = vmatpush1.xpose.msra.mxu0 0.0
        %1044 = vmatprep.subr.mxu0 0.0
        %1045 = vmatpush1.xpose.msra.mxu0 0.0
        %1046 = vmatprep.subr.mxu0 0.0
        %1047 = vmatpush1.xpose.msra.mxu0 0.0
        %1048 = vmatprep.subr.mxu0 0.0
        %1049 = vmatpush1.xpose.msra.mxu0 0.0
        %1050 = vmatprep.subr.mxu0 0.0
        %1051 = vmatpush1.xpose.msra.mxu0 0.0
        %1052 = vmatprep.subr.mxu0 0.0
        %1053 = vmatpush1.xpose.msra.mxu0 0.0
        %1054 = vmatprep.subr.mxu0 0.0
        %1055 = vmatpush1.xpose.msra.mxu0 0.0
        %1056 = vmatprep.subr.mxu0 0.0
        %1057 = vmatpush1.xpose.msra.mxu0 0.0
        %1058 = vmatprep.subr.mxu0 0.0
        %1059 = vmatpush1.xpose.msra.mxu0 0.0
        %1060 = vmatprep.subr.mxu0 0.0
        %1061 = vmatpush1.xpose.msra.mxu0 0.0
        %1062 = vmatprep.subr.mxu0 0.0
        %1063 = vmatpush1.xpose.msra.mxu0 0.0
        %1064 = vmatprep.subr.mxu0 0.0
        %1065 = vmatpush1.xpose.msra.mxu0 0.0
        %1066 = vmatprep.subr.mxu0 0.0
        %1067 = vmatpush1.xpose.msra.mxu0 0.0
        %1068 = vmatprep.subr.mxu0 0.0
        %1069 = vmatpush1.xpose.msra.mxu0 0.0
        %1070 = vmatprep.subr.mxu0 0.0
        %1071 = vmatpush1.xpose.msra.mxu0 0.0
        %1072 = vmatprep.subr.mxu0 0.0
        %1073 = vmatpush1.xpose.msra.mxu0 0.0
        %1074 = vmatprep.subr.mxu0 0.0
        %1075 = vmatpush1.xpose.msra.mxu0 0.0
        %1076 = vmatprep.subr.mxu0 0.0
        %1077 = vmatpush1.xpose.msra.mxu0 0.0
        %1078 = vmatprep.subr.mxu0 0.0
        %1079 = vmatpush1.xpose.msra.mxu0 0.0
        %1080 = vmatprep.subr.mxu0 0.0
        %1081 = vmatpush1.xpose.msra.mxu0 0.0
        %1082 = vmatprep.subr.mxu0 0.0
        %1083 = vmatpush1.xpose.msra.mxu0 0.0
        %1084 = vmatprep.subr.mxu0 0.0
        %1085 = vmatpush1.xpose.msra.mxu0 0.0
        %1086 = vmatprep.mubr.f32.mxu0 0.0
        %1087 = vmatmul.mubr.f32.gmra.mrb[0].mxu0 %v1018
        %v1088 = vpop.f32.mrb[0].mxu0
        %v1089 = vadd.f32 0.0, %v1088
        %v1090 = vpop.f32.mrb[0].mxu0
        %1091 = vdwg.mxu0
        %v1092 = vmul.f32 %v1089, 0.35355338
        %v1093 = vadd.f32 %v1092, %v757
        %v1094 = vsel %vm676, %v1093, -inf
        %1095 = vmax.xlane.f32.xlu0 %v1094
        %v1096 = vpop.xlane.xlu0 %1095
        %v1097 = vsub.f32 %v1093, %v1096
        %v1098 = vmul.f32 %v1097, 1.442695
        %v1099 = vpow.pop %v1098
        %v1100 = vsel %vm676, %v1099, 0.0
        %1101 = vadd.xlane.f32.xlu0 %v1100
        %v1102 = vpop.xlane.xlu0 %1101
        %v1103 = vrcp.pop %v1102
        %v1104 = vmul.f32 %v1099, %v1103
        %1105 = vrot.lane.b32.xlu0 %v671, 48
        %v1106 = vpop.permute.xlu0 %1105
        %v1109 = vsel %vm676, %v1104, 0
        %1111 = vmatprep.subr.mxu0 0.0
        %1112 = vmatpush1.msra.mxu0 %v1106
        %1113 = vmatprep.subr.mxu0 0.0
        %1114 = vmatpush1.msra.mxu0 0.0
        %1115 = vmatprep.subr.mxu0 0.0
        %1116 = vmatpush1.msra.mxu0 0.0
        %1117 = vmatprep.subr.mxu0 0.0
        %1118 = vmatpush1.msra.mxu0 0.0
        %1119 = vmatprep.subr.mxu0 0.0
        %1120 = vmatpush1.msra.mxu0 0.0
        %1121 = vmatprep.subr.mxu0 0.0
        %1122 = vmatpush1.msra.mxu0 0.0
        %1123 = vmatprep.subr.mxu0 0.0
        %1124 = vmatpush1.msra.mxu0 0.0
        %1125 = vmatprep.subr.mxu0 0.0
        %1126 = vmatpush1.msra.mxu0 0.0
        %1127 = vmatprep.subr.mxu0 0.0
        %1128 = vmatpush1.msra.mxu0 0.0
        %1129 = vmatprep.subr.mxu0 0.0
        %1130 = vmatpush1.msra.mxu0 0.0
        %1131 = vmatprep.subr.mxu0 0.0
        %1132 = vmatpush1.msra.mxu0 0.0
        %1133 = vmatprep.subr.mxu0 0.0
        %1134 = vmatpush1.msra.mxu0 0.0
        %1135 = vmatprep.subr.mxu0 0.0
        %1136 = vmatpush1.msra.mxu0 0.0
        %1137 = vmatprep.subr.mxu0 0.0
        %1138 = vmatpush1.msra.mxu0 0.0
        %1139 = vmatprep.subr.mxu0 0.0
        %1140 = vmatpush1.msra.mxu0 0.0
        %1141 = vmatprep.subr.mxu0 0.0
        %1142 = vmatpush1.msra.mxu0 0.0
        %1143 = vmatprep.subr.mxu0 0.0
        %1144 = vmatpush1.msra.mxu0 0.0
        %1145 = vmatprep.subr.mxu0 0.0
        %1146 = vmatpush1.msra.mxu0 0.0
        %1147 = vmatprep.subr.mxu0 0.0
        %1148 = vmatpush1.msra.mxu0 0.0
        %1149 = vmatprep.subr.mxu0 0.0
        %1150 = vmatpush1.msra.mxu0 0.0
        %1151 = vmatprep.subr.mxu0 0.0
        %1152 = vmatpush1.msra.mxu0 0.0
        %1153 = vmatprep.subr.mxu0 0.0
        %1154 = vmatpush1.msra.mxu0 0.0
        %1155 = vmatprep.subr.mxu0 0.0
        %1156 = vmatpush1.msra.mxu0 0.0
        %1157 = vmatprep.subr.mxu0 0.0
        %1158 = vmatpush1.msra.mxu0 0.0
        %1159 = vmatprep.subr.mxu0 0.0
        %1160 = vmatpush1.msra.mxu0 0.0
        %1161 = vmatprep.subr.mxu0 0.0
        %1162 = vmatpush1.msra.mxu0 0.0
        %1163 = vmatprep.subr.mxu0 0.0
        %1164 = vmatpush1.msra.mxu0 0.0
        %1165 = vmatprep.subr.mxu0 0.0
        %1166 = vmatpush1.msra.mxu0 0.0
        %1167 = vmatprep.subr.mxu0 0.0
        %1168 = vmatpush1.msra.mxu0 0.0
        %1169 = vmatprep.subr.mxu0 0.0
        %1170 = vmatpush1.msra.mxu0 0.0
        %1171 = vmatprep.subr.mxu0 0.0
        %1172 = vmatpush1.msra.mxu0 0.0
        %1173 = vmatprep.subr.mxu0 0.0
        %1174 = vmatpush1.msra.mxu0 0.0
        %1175 = vmatprep.mubr.f32.mxu0 0.0
        %1176 = vmatmul.mubr.f32.gmra.mrb[0].mxu0 %v1109
        %v1177 = vpop.f32.mrb[0].mxu0
        %v1178 = vadd.f32 0.0, %v1177
        %v1179 = vpop.f32.mrb[0].mxu0
        %1180 = vdwg.mxu0
        %1181 = vrot.lane.b32.xlu0 %v580, 104
        %v1182 = vpop.permute.xlu0 %1181
        %1183 = vrot.lane.b32.xlu0 %v671, 72
        %v1184 = vpop.permute.xlu0 %1183
        %v1185 = vsel %vm676, %v1182, 0
        %v1187 = vsel %vm676, %v1184, 0
        %1189 = vmatprep.subr.mxu0 0.0
        %1190 = vmatpush1.xpose.msra.mxu0 %v1187
        %1191 = vmatprep.subr.mxu0 0.0
        %1192 = vmatpush1.xpose.msra.mxu0 0.0
        %1193 = vmatprep.subr.mxu0 0.0
        %1194 = vmatpush1.xpose.msra.mxu0 0.0
        %1195 = vmatprep.subr.mxu0 0.0
        %1196 = vmatpush1.xpose.msra.mxu0 0.0
        %1197 = vmatprep.subr.mxu0 0.0
        %1198 = vmatpush1.xpose.msra.mxu0 0.0
        %1199 = vmatprep.subr.mxu0 0.0
        %1200 = vmatpush1.xpose.msra.mxu0 0.0
        %1201 = vmatprep.subr.mxu0 0.0
        %1202 = vmatpush1.xpose.msra.mxu0 0.0
        %1203 = vmatprep.subr.mxu0 0.0
        %1204 = vmatpush1.xpose.msra.mxu0 0.0
        %1205 = vmatprep.subr.mxu0 0.0
        %1206 = vmatpush1.xpose.msra.mxu0 0.0
        %1207 = vmatprep.subr.mxu0 0.0
        %1208 = vmatpush1.xpose.msra.mxu0 0.0
        %1209 = vmatprep.subr.mxu0 0.0
        %1210 = vmatpush1.xpose.msra.mxu0 0.0
        %1211 = vmatprep.subr.mxu0 0.0
        %1212 = vmatpush1.xpose.msra.mxu0 0.0
        %1213 = vmatprep.subr.mxu0 0.0
        %1214 = vmatpush1.xpose.msra.mxu0 0.0
        %1215 = vmatprep.subr.mxu0 0.0
        %1216 = vmatpush1.xpose.msra.mxu0 0.0
        %1217 = vmatprep.subr.mxu0 0.0
        %1218 = vmatpush1.xpose.msra.mxu0 0.0
        %1219 = vmatprep.subr.mxu0 0.0
        %1220 = vmatpush1.xpose.msra.mxu0 0.0
        %1221 = vmatprep.subr.mxu0 0.0
        %1222 = vmatpush1.xpose.msra.mxu0 0.0
        %1223 = vmatprep.subr.mxu0 0.0
        %1224 = vmatpush1.xpose.msra.mxu0 0.0
        %1225 = vmatprep.subr.mxu0 0.0
        %1226 = vmatpush1.xpose.msra.mxu0 0.0
        %1227 = vmatprep.subr.mxu0 0.0
        %1228 = vmatpush1.xpose.msra.mxu0 0.0
        %1229 = vmatprep.subr.mxu0 0.0
        %1230 = vmatpush1.xpose.msra.mxu0 0.0
        %1231 = vmatprep.subr.mxu0 0.0
        %1232 = vmatpush1.xpose.msra.mxu0 0.0
        %1233 = vmatprep.subr.mxu0 0.0
        %1234 = vmatpush1.xpose.msra.mxu0 0.0
        %1235 = vmatprep.subr.mxu0 0.0
        %1236 = vmatpush1.xpose.msra.mxu0 0.0
        %1237 = vmatprep.subr.mxu0 0.0
        %1238 = vmatpush1.xpose.msra.mxu0 0.0
        %1239 = vmatprep.subr.mxu0 0.0
        %1240 = vmatpush1.xpose.msra.mxu0 0.0
        %1241 = vmatprep.subr.mxu0 0.0
        %1242 = vmatpush1.xpose.msra.mxu0 0.0
        %1243 = vmatprep.subr.mxu0 0.0
        %1244 = vmatpush1.xpose.msra.mxu0 0.0
        %1245 = vmatprep.subr.mxu0 0.0
        %1246 = vmatpush1.xpose.msra.mxu0 0.0
        %1247 = vmatprep.subr.mxu0 0.0
        %1248 = vmatpush1.xpose.msra.mxu0 0.0
        %1249 = vmatprep.subr.mxu0 0.0
        %1250 = vmatpush1.xpose.msra.mxu0 0.0
        %1251 = vmatprep.subr.mxu0 0.0
        %1252 = vmatpush1.xpose.msra.mxu0 0.0
        %1253 = vmatprep.mubr.f32.mxu0 0.0
        %1254 = vmatmul.mubr.f32.gmra.mrb[0].mxu0 %v1185
        %v1255 = vpop.f32.mrb[0].mxu0
        %v1256 = vadd.f32 0.0, %v1255
        %v1257 = vpop.f32.mrb[0].mxu0
        %1258 = vdwg.mxu0
        %v1259 = vmul.f32 %v1256, 0.35355338
        %v1260 = vadd.f32 %v1259, %v757
        %v1261 = vsel %vm676, %v1260, -inf
        %1262 = vmax.xlane.f32.xlu0 %v1261
        %v1263 = vpop.xlane.xlu0 %1262
        %v1264 = vsub.f32 %v1260, %v1263
        %v1265 = vmul.f32 %v1264, 1.442695
        %v1266 = vpow.pop %v1265
        %v1267 = vsel %vm676, %v1266, 0.0
        %1268 = vadd.xlane.f32.xlu0 %v1267
        %v1269 = vpop.xlane.xlu0 %1268
        %v1270 = vrcp.pop %v1269
        %v1271 = vmul.f32 %v1266, %v1270
        %1272 = vrot.lane.b32.xlu0 %v671, 40
        %v1273 = vpop.permute.xlu0 %1272
        %v1276 = vsel %vm676, %v1271, 0
        %1278 = vmatprep.subr.mxu0 0.0
        %1279 = vmatpush1.msra.mxu0 %v1273
        %1280 = vmatprep.subr.mxu0 0.0
        %1281 = vmatpush1.msra.mxu0 0.0
        %1282 = vmatprep.subr.mxu0 0.0
        %1283 = vmatpush1.msra.mxu0 0.0
        %1284 = vmatprep.subr.mxu0 0.0
        %1285 = vmatpush1.msra.mxu0 0.0
        %1286 = vmatprep.subr.mxu0 0.0
        %1287 = vmatpush1.msra.mxu0 0.0
        %1288 = vmatprep.subr.mxu0 0.0
        %1289 = vmatpush1.msra.mxu0 0.0
        %1290 = vmatprep.subr.mxu0 0.0
        %1291 = vmatpush1.msra.mxu0 0.0
        %1292 = vmatprep.subr.mxu0 0.0
        %1293 = vmatpush1.msra.mxu0 0.0
        %1294 = vmatprep.subr.mxu0 0.0
        %1295 = vmatpush1.msra.mxu0 0.0
        %1296 = vmatprep.subr.mxu0 0.0
        %1297 = vmatpush1.msra.mxu0 0.0
        %1298 = vmatprep.subr.mxu0 0.0
        %1299 = vmatpush1.msra.mxu0 0.0
        %1300 = vmatprep.subr.mxu0 0.0
        %1301 = vmatpush1.msra.mxu0 0.0
        %1302 = vmatprep.subr.mxu0 0.0
        %1303 = vmatpush1.msra.mxu0 0.0
        %1304 = vmatprep.subr.mxu0 0.0
        %1305 = vmatpush1.msra.mxu0 0.0
        %1306 = vmatprep.subr.mxu0 0.0
        %1307 = vmatpush1.msra.mxu0 0.0
        %1308 = vmatprep.subr.mxu0 0.0
        %1309 = vmatpush1.msra.mxu0 0.0
        %1310 = vmatprep.subr.mxu0 0.0
        %1311 = vmatpush1.msra.mxu0 0.0
        %1312 = vmatprep.subr.mxu0 0.0
        %1313 = vmatpush1.msra.mxu0 0.0
        %1314 = vmatprep.subr.mxu0 0.0
        %1315 = vmatpush1.msra.mxu0 0.0
        %1316 = vmatprep.subr.mxu0 0.0
        %1317 = vmatpush1.msra.mxu0 0.0
        %1318 = vmatprep.subr.mxu0 0.0
        %1319 = vmatpush1.msra.mxu0 0.0
        %1320 = vmatprep.subr.mxu0 0.0
        %1321 = vmatpush1.msra.mxu0 0.0
        %1322 = vmatprep.subr.mxu0 0.0
        %1323 = vmatpush1.msra.mxu0 0.0
        %1324 = vmatprep.subr.mxu0 0.0
        %1325 = vmatpush1.msra.mxu0 0.0
        %1326 = vmatprep.subr.mxu0 0.0
        %1327 = vmatpush1.msra.mxu0 0.0
        %1328 = vmatprep.subr.mxu0 0.0
        %1329 = vmatpush1.msra.mxu0 0.0
        %1330 = vmatprep.subr.mxu0 0.0
        %1331 = vmatpush1.msra.mxu0 0.0
        %1332 = vmatprep.subr.mxu0 0.0
        %1333 = vmatpush1.msra.mxu0 0.0
        %1334 = vmatprep.subr.mxu0 0.0
        %1335 = vmatpush1.msra.mxu0 0.0
        %1336 = vmatprep.subr.mxu0 0.0
        %1337 = vmatpush1.msra.mxu0 0.0
        %1338 = vmatprep.subr.mxu0 0.0
        %1339 = vmatpush1.msra.mxu0 0.0
        %1340 = vmatprep.subr.mxu0 0.0
        %1341 = vmatpush1.msra.mxu0 0.0
        %1342 = vmatprep.mubr.f32.mxu0 0.0
        %1343 = vmatmul.mubr.f32.gmra.mrb[0].mxu0 %v1276
        %v1344 = vpop.f32.mrb[0].mxu0
        %v1345 = vadd.f32 0.0, %v1344
        %v1346 = vpop.f32.mrb[0].mxu0
        %1347 = vdwg.mxu0
        %1349 = vrot.lane.b32.xlu0 %v1011, 8
        %v1350 = vpop.permute.xlu0 %1349
        %1353 = vrot.lane.b32.xlu0 %v1178, 16
        %v1354 = vpop.permute.xlu0 %1353
        %1357 = vrot.lane.b32.xlu0 %v1345, 24
        %v1358 = vpop.permute.xlu0 %1357
        %v1360 = vsel %vm676, %v844, %v1350
        %vm1361 = vcmask 130048
        %v1362 = vsel %vm1361, %v1360, %v1354
        %vm1363 = vcmask 195584
        %v1364 = vsel %vm1363, %v1362, %v1358
        %v1365 = vld [vmem:[#allocation10] sm:$0xff]
        %v1366 = vld [vmem:[#allocation10 + $0x8] sm:$0xff]
        %v1367 = vld [vmem:[#allocation10 + $0x10] sm:$0xff]
        %v1368 = vld [vmem:[#allocation10 + $0x18] sm:$0xff]
        %v1369 = vld [vmem:[%s8] sm:$0x1]
        %v1371 = vlaneseq
        %v1372 = vshrl.u32 %v1371, 7
        %v1373 = vsub.s32 0, %v1372
        %v1374 = vrot.slane %v1369, %v1373
        %v1377 = vsel %vm509, %v1364, 0
        %1379 = vmatprep.subr.mxu0 0.0
        %1380 = vmatpush1.msra.mxu0 %v1365
        %1381 = vmatprep.subr.mxu0 0.0
        %1382 = vmatpush1.msra.mxu0 %v1366
        %1383 = vmatprep.subr.mxu0 0.0
        %1384 = vmatpush1.msra.mxu0 %v1367
        %1385 = vmatprep.subr.mxu0 0.0
        %1386 = vmatpush1.msra.mxu0 %v1368
        %1387 = vmatprep.subr.mxu0 0.0
        %1388 = vmatpush1.msra.mxu0 0.0
        %1389 = vmatprep.subr.mxu0 0.0
        %1390 = vmatpush1.msra.mxu0 0.0
        %1391 = vmatprep.subr.mxu0 0.0
        %1392 = vmatpush1.msra.mxu0 0.0
        %1393 = vmatprep.subr.mxu0 0.0
        %1394 = vmatpush1.msra.mxu0 0.0
        %1395 = vmatprep.subr.mxu0 0.0
        %1396 = vmatpush1.msra.mxu0 0.0
        %1397 = vmatprep.subr.mxu0 0.0
        %1398 = vmatpush1.msra.mxu0 0.0
        %1399 = vmatprep.subr.mxu0 0.0
        %1400 = vmatpush1.msra.mxu0 0.0
        %1401 = vmatprep.subr.mxu0 0.0
        %1402 = vmatpush1.msra.mxu0 0.0
        %1403 = vmatprep.subr.mxu0 0.0
        %1404 = vmatpush1.msra.mxu0 0.0
        %1405 = vmatprep.subr.mxu0 0.0
        %1406 = vmatpush1.msra.mxu0 0.0
        %1407 = vmatprep.subr.mxu0 0.0
        %1408 = vmatpush1.msra.mxu0 0.0
        %1409 = vmatprep.subr.mxu0 0.0
        %1410 = vmatpush1.msra.mxu0 0.0
        %1411 = vmatprep.subr.mxu0 0.0
        %1412 = vmatpush1.msra.mxu0 0.0
        %1413 = vmatprep.subr.mxu0 0.0
        %1414 = vmatpush1.msra.mxu0 0.0
        %1415 = vmatprep.subr.mxu0 0.0
        %1416 = vmatpush1.msra.mxu0 0.0
        %1417 = vmatprep.subr.mxu0 0.0
        %1418 = vmatpush1.msra.mxu0 0.0
        %1419 = vmatprep.subr.mxu0 0.0
        %1420 = vmatpush1.msra.mxu0 0.0
        %1421 = vmatprep.subr.mxu0 0.0
        %1422 = vmatpush1.msra.mxu0 0.0
        %1423 = vmatprep.subr.mxu0 0.0
        %1424 = vmatpush1.msra.mxu0 0.0
        %1425 = vmatprep.subr.mxu0 0.0
        %1426 = vmatpush1.msra.mxu0 0.0
        %1427 = vmatprep.subr.mxu0 0.0
        %1428 = vmatpush1.msra.mxu0 0.0
        %1429 = vmatprep.subr.mxu0 0.0
        %1430 = vmatpush1.msra.mxu0 0.0
        %1431 = vmatprep.subr.mxu0 0.0
        %1432 = vmatpush1.msra.mxu0 0.0
        %1433 = vmatprep.subr.mxu0 0.0
        %1434 = vmatpush1.msra.mxu0 0.0
        %1435 = vmatprep.subr.mxu0 0.0
        %1436 = vmatpush1.msra.mxu0 0.0
        %1437 = vmatprep.subr.mxu0 0.0
        %1438 = vmatpush1.msra.mxu0 0.0
        %1439 = vmatprep.subr.mxu0 0.0
        %1440 = vmatpush1.msra.mxu0 0.0
        %1441 = vmatprep.subr.mxu0 0.0
        %1442 = vmatpush1.msra.mxu0 0.0
        %1443 = vmatprep.mubr.f32.mxu0 0.0
        %1444 = vmatmul.mubr.f32.gmra.mrb[0].mxu0 %v1377
        %v1445 = vpop.f32.mrb[0].mxu0
        %v1446 = vadd.f32 %v1374, %v1445
        %v1447 = vpop.f32.mrb[0].mxu0
        %1448 = vdwg.mxu0
        %v1449 = vadd.f32 %v1446, %v496
        %v1450 = vld [vmem:[%s9] sm:$0x1]
        %v1451 = vld [vmem:[%s10] sm:$0x1]
        %v1452 = vsel %vm509, %v1449, 0.0
        %1453 = vadd.xlane.f32.xlu0 %v1452
        %v1454 = vpop.xlane.xlu0 %1453
        %v1455 = vrcp.pop 32.0
        %v1456 = vmul.f32 %v1454, %v1455
        %v1457 = vsub.f32 %v1449, %v1456
        %v1458 = vmul.f32 %v1457, %v1457
        %v1459 = vsel %vm509, %v1458, 0.0
        %1460 = vadd.xlane.f32.xlu0 %v1459
        %v1461 = vpop.xlane.xlu0 %1460
        %v1462 = vmul.f32 %v1461, %v1455
        %v1463 = vadd.f32 %v1462, 1e-12
        %v1464 = vrsqrt.pop %v1463
        %v1465 = vmul.f32 %v1457, %v1464
        %v1467 = vlaneseq
        %v1468 = vshrl.u32 %v1467, 7
        %v1469 = vsub.s32 0, %v1468
        %v1470 = vrot.slane %v1450, %v1469
        %v1472 = vmul.f32 %v1465, %v1470
        %v1474 = vlaneseq
        %v1475 = vshrl.u32 %v1474, 7
        %v1476 = vsub.s32 0, %v1475
        %v1477 = vrot.slane %v1451, %v1476
        %v1479 = vadd.f32 %v1472, %v1477
        %1480 = vst.msk [vmem:[%s492] sm:$0xff] %vm509, %v1479
        %s1481 = sand.u32 %s286, 1
        %s1482 = scalar_lea.sflag [#allocation4], %s1481
        %s1483 = sand.u32 %s286, 1
        %s1484 = smul.addr %s1483, 8
        %s1485 = scalar_lea.vmem [#allocation11], %s1484
        // Predicated region
        $region85: #{tpu_custom_call.1} parent=63 // pred_check
          %p1486 = pneg %p296
        $region86: #{tpu_custom_call.1} parent=63 // pred_check_branch
          %1488 = sbr.rel (%p1486) target = $region88
        $region87: #{tpu_custom_call.1} parent=63 // pred_region
          %s1490 = ssub.s32 128, 128
          %1491 = vsyncadd %s1482, %s1490
          %s1492 = smul.addr %s32, 128
          %s1493 = scalar_lea.hbm %s11, %s1492
          %s1495 = sshll.u32 %s1485, 4
          %s1496 = int_to_ptr.vmem [resolvable:$true] %s1495
          %1498 = dma.vmem_to_hbm [thread:$0]  %s1496, 128, %s1493, %s1482
        $region88: #{tpu_custom_call.1} parent=63 // pred_fallthru
          _
      $region64: #{tpu_custom_call.1} parent=5 // pred_fallthru
        _
      %p1499 = scmp.le.s32.totalorder 2, %s27
      // Predicated region
      $region89: #{tpu_custom_call.1} parent=5 // pred_check
        %p1500 = pneg %p1499
      $region90: #{tpu_custom_call.1} parent=5 // pred_check_branch
        %1502 = sbr.rel (%p1500) target = $region92
      $region91: #{tpu_custom_call.1} parent=5 // pred_region
        %s1503 = ssub.s32 %s27, 2
        // Predicated region
        $region93: #{tpu_custom_call.1} parent=91 // pred_check
          %p1504 = pneg %p302
        $region94: #{tpu_custom_call.1} parent=91 // pred_check_branch
          %1506 = sbr.rel (%p1504) target = $region96
        $region95: #{tpu_custom_call.1} parent=91 // pred_region
          %s1507 = sand.u32 %s287, 1
          %s1508 = scalar_lea.sflag [#allocation4], %s1507
          %s1509 = sand.u32 %s287, 1
          %s1510 = smul.addr %s1509, 8
          %s1511 = scalar_lea.vmem [#allocation11], %s1510
          %1512 = dma.done %s1508, 128
        $region96: #{tpu_custom_call.1} parent=91 // pred_fallthru
          _
      $region92: #{tpu_custom_call.1} parent=5 // pred_fallthru
        _
    $region6: #{tpu_custom_call.1} parent=1 // loop_footer
      %s31 = sadd.s32 1, %s27
    $region7: #{tpu_custom_call.1} parent=1 // loop_footer_branch
      %26 = sbr.rel target = $region3
    $region8: #{tpu_custom_call.1} parent=1 // loop_exit
      _
    %1513 = vsyncpa [#allocation3], 1
    %s1514 = scalar_lea.sflag [#allocation3], 1
    %1515 = vsyncpa %s1514, 1
    %1516 = vsyncpa [#allocation6], 1
    %s1517 = scalar_lea.sflag [#allocation6], 1
    %1518 = vsyncpa %s1517, 1
    %1519 = vsyncpa [#allocation9], 1
    %1520 = vsyncpa [#allocation4], 1
    %s1521 = scalar_lea.sflag [#allocation4], 1
    %1522 = vsyncpa %s1521, 1

</llo_original>
